<compile_context>
chip_gen: v5e
topology: v5e:2x2
jax: 0.10.0
libtpu: 0.0.40
codegen_flags: <defaults>
</compile_context>

<pallas_src>
import jax
import jax.numpy as jnp
from jax.experimental import pallas as pl
from jax.experimental.pallas import tpu as pltpu


# ----------------------------- Pallas bidirectional LSTM kernel -----------------------------

def _bilstm_kernel(gxf_ref, gxb_ref, whh_ref, yf_ref, yb_ref, hf, cf, hb, cb):
    """One (batch-block, time-chunk) grid step: interleaved fwd + bwd LSTM recurrence.

    gxf_ref : (1, Tc, Bb, 4H)  fwd-direction x@W_ih + bias for chunk c        (forward time order)
    gxb_ref : (1, Tc, Bb, 4H)  bwd-direction x@W_ih + bias for chunk nc-1-c   (forward time order)
    whh_ref : (2, H, 4H)       recurrent weights for both directions (transposed)
    yf_ref  : (Tc, Bb, H)      fwd hidden outputs for chunk c
    yb_ref  : (Tc, Bb, H)      bwd hidden outputs for chunk nc-1-c
    hf/cf/hb/cb : (Bb, H) f32  VMEM scratch carrying each direction's state across chunks.
    """
    @pl.when(pl.program_id(1) == 0)
    def _():
        hf[...] = jnp.zeros_like(hf)
        cf[...] = jnp.zeros_like(cf)
        hb[...] = jnp.zeros_like(hb)
        cb[...] = jnp.zeros_like(cb)

    Tc = gxf_ref.shape[1]
    H = hf.shape[-1]
    w_f = whh_ref[0]          # (H, 4H), resident in VMEM
    w_b = whh_ref[1]

    h_f, c_f = hf[...], cf[...]
    h_b, c_b = hb[...], cb[...]

    def cell(gates, c):
        # PyTorch gate order [i, f, g, o]; per-gate EUP calls keep live vregs small.
        i = jax.nn.sigmoid(gates[:, :H])
        f = jax.nn.sigmoid(gates[:, H:2 * H])
        g = jnp.tanh(gates[:, 2 * H:3 * H])
        o = jax.nn.sigmoid(gates[:, 3 * H:])
        c = f * c + i * g
        return o * jnp.tanh(c), c

    # Fully unrolled over the chunk (static indices only).  The fwd and bwd chains are
    # independent, so their MXU pushes / EUP transcendentals interleave in the VLIW schedule.
    for t in range(Tc):
        tb = Tc - 1 - t
        mm_f = jnp.dot(h_f.astype(w_f.dtype), w_f, preferred_element_type=jnp.float32)
        mm_b = jnp.dot(h_b.astype(w_b.dtype), w_b, preferred_element_type=jnp.float32)
        h_f, c_f = cell(gxf_ref[0, t].astype(jnp.float32) + mm_f, c_f)
        h_b, c_b = cell(gxb_ref[0, tb].astype(jnp.float32) + mm_b, c_b)
        yf_ref[t] = h_f.astype(yf_ref.dtype)
        yb_ref[tb] = h_b.astype(yb_ref.dtype)

    hf[...] = h_f
    cf[...] = c_f
    hb[...] = h_b
    cb[...] = c_b


def bilstm_pallas(gx, w_hh_t, *, time_chunk=32, out_dtype=jnp.float32,
                  batch_block=None, vmem_budget_bytes=40 * 1024 * 1024):
    """Fused bidirectional LSTM recurrence.

    gx     : (2, T, B, 4H) gate pre-activations incl. bias (PyTorch gate order [i, f, g, o])
    w_hh_t : (2, H, 4H)    transposed recurrent weights (same gate order / dtype as gx ideally)
    returns: (y_fwd, y_bwd), each (T, B, H) in forward time order, dtype out_dtype.
    """
    _, T, B, G4 = gx.shape
    H = w_hh_t.shape[1]
    assert G4 == 4 * H

    # ---- batch padding: sublane alignment (8 for f32, 16 for packed bf16) -------------------
    b_mult = 16 if jnp.dtype(gx.dtype).itemsize <= 2 else 8
    Bp = -(-B // b_mult) * b_mult
    if Bp != B:
        gx = jnp.pad(gx, ((0, 0), (0, 0), (0, Bp - B), (0, 0)))
    Bb = Bp if batch_block is None else max(1, min(batch_block, Bp))
    if Bp % Bb:
        extra = Bb - Bp % Bb
        gx = jnp.pad(gx, ((0, 0), (0, 0), (0, extra), (0, 0)))
        Bp += extra
    nb = Bp // Bb

    # ---- time chunking, auto-shrunk to respect the VMEM budget ------------------------------
    gx_bytes = jnp.dtype(gx.dtype).itemsize
    y_bytes = jnp.dtype(out_dtype).itemsize
    w_bytes = jnp.dtype(w_hh_t.dtype).itemsize

    def vmem_need(tc):
        gx_blk = tc * Bb * G4 * gx_bytes          # one direction's gx chunk
        y_blk = tc * Bb * H * y_bytes             # one direction's y chunk
        whh = 2 * H * G4 * w_bytes                # both directions' recurrent weights
        scratch = 4 * Bb * H * 4                  # h/c f32 scratch, both directions
        # fwd + bwd blocks, each double-buffered by the pipeline; whh also double-buffered.
        # TODO(synk): pipeline_mode=pl.Buffered(1) on the (constant-index) whh spec would
        # reclaim its second buffer.
        return 2 * 2 * (gx_blk + y_blk) + 2 * whh + scratch

    Tc = max(1, min(time_chunk, T))
    while Tc > 1 and vmem_need(Tc) > vmem_budget_bytes:
        Tc = max(1, Tc // 2)
    nc = -(-T // Tc)
    T_pad = nc * Tc
    if T_pad != T:
        # Zero-padded gate pre-activations are a no-op on a zero (h, c) state, so padding at the
        # end of time is safe for both directions (backward consumes the pad first).  This relies
        # on the bias having been folded into gx BEFORE padding.
        gx = jnp.pad(gx, ((0, 0), (0, T_pad - T), (0, 0), (0, 0)))

    # Explicit scoped-VMEM limit: generous margin over the block estimate, but capped below the
    # per-TensorCore physical budget of every listed generation (v7x: 64 MiB/TC).
    vmem_limit = int(min(max(int(vmem_need(Tc) * 1.25) + (2 << 20), 16 * 1024 * 1024),
                         56 * 1024 * 1024))

    y_fwd, y_bwd = pl.pallas_call(
        _bilstm_kernel,
        out_shape=(jax.ShapeDtypeStruct((T_pad, Bp, H), out_dtype),
                   jax.ShapeDtypeStruct((T_pad, Bp, H), out_dtype)),
        grid_spec=pltpu.PrefetchScalarGridSpec(
            num_scalar_prefetch=0,
            grid=(nb, nc),
            in_specs=[
                # forward direction walks chunks 0..nc-1
                pl.BlockSpec((1, Tc, Bb, G4), lambda b, c: (0, c, b, 0)),
                # backward direction walks chunks nc-1..0 (no host-side reversal)
                pl.BlockSpec((1, Tc, Bb, G4), lambda b, c: (1, nc - 1 - c, b, 0)),
                # both directions' recurrent weights, constant block across the grid
                pl.BlockSpec((2, H, G4), lambda b, c: (0, 0, 0)),
            ],
            out_specs=[
                pl.BlockSpec((Tc, Bb, H), lambda b, c: (c, b, 0)),
                pl.BlockSpec((Tc, Bb, H), lambda b, c: (nc - 1 - c, b, 0)),
            ],
            scratch_shapes=[
                pltpu.VMEM((Bb, H), jnp.float32),   # h fwd
                pltpu.VMEM((Bb, H), jnp.float32),   # c fwd
                pltpu.VMEM((Bb, H), jnp.float32),   # h bwd
                pltpu.VMEM((Bb, H), jnp.float32),   # c bwd
            ],
        ),
        compiler_params=pltpu.CompilerParams(
            # batch blocks are independent (megacore sharding); the time recurrence is serial.
            dimension_semantics=("parallel", "arbitrary"),
            vmem_limit_bytes=vmem_limit),
    )(gx, gx, w_hh_t)

    return y_fwd[:T, :B], y_bwd[:T, :B]


# ----------------------------- Parameter prep (PyTorch layout -> kernel layout) -------------

def prepare_encoder_params(params):
    layers = []
    for layer in params["lstm"]:
        wih_t = jnp.stack([layer[d][0].T for d in ("fwd", "bwd")])          # (2, E_in, 4H)
        whh_t = jnp.stack([layer[d][1].T for d in ("fwd", "bwd")])          # (2, H, 4H)
        bias = jnp.stack([layer[d][2] + layer[d][3] for d in ("fwd", "bwd")])  # (2, 4H)
        layers.append({
            "w_ih_t": wih_t.astype(jnp.float32),
            "w_hh_t": whh_t.astype(jnp.float32),
            "bias": bias.astype(jnp.float32),
        })
    return {"embedding": params["embedding"], "layers": layers}


# ----------------------------- Encoder forward ----------------------------------------------

def encoder_forward(params, tokens, *, time_chunk=32, matmul_dtype=jnp.bfloat16,
                    vmem_budget_bytes=40 * 1024 * 1024):
    """tokens: (T, B) int32 -> output (T, B, 2*hidden_size) float32.

    matmul_dtype controls the streamed gx / w_hh / intermediate-y precision (bf16 default for
    the MXU fast path and halved HBM bytes); gate math and (h, c) state are always f32.
    """
    emb = params["embedding"][tokens]                         # (T, B, E) embedding gather
    # TODO(synk): nn.Dropout / inter-layer LSTM dropout are identity in eval mode;
    # training-mode stochastic dropout is not implemented.
    y_fwd = y_bwd = None
    n_layers = len(params["layers"])
    for li, layer in enumerate(params["layers"]):
        wih_t = layer["w_ih_t"].astype(matmul_dtype)
        whh_t = layer["w_hh_t"].astype(matmul_dtype)
        bias = layer["bias"]
        H = whh_t.shape[1]
        if li == 0:
            # Hoisted input projection for all T steps, both directions, one big MXU matmul.
            gx = jnp.einsum("tbe,deg->dtbg", emb.astype(matmul_dtype), wih_t,
                            preferred_element_type=jnp.float32)
        else:
            # Consume the previous layer's per-direction outputs directly (no concatenate):
            # split W_ih rows into the fwd/bwd halves and sum the two projections.
            wih_split = wih_t.reshape(2, 2, H, wih_t.shape[-1])   # (dst_dir, src_dir, H, 4H)
            gx = (jnp.einsum("tbh,dhg->dtbg", y_fwd.astype(matmul_dtype), wih_split[:, 0],
                             preferred_element_type=jnp.float32)
                  + jnp.einsum("tbh,dhg->dtbg", y_bwd.astype(matmul_dtype), wih_split[:, 1],
                               preferred_element_type=jnp.float32))
        # Bias folded here (before any padding), then streamed to the kernel in matmul_dtype.
        gx = (gx + bias[:, None, None, :]).astype(matmul_dtype)
        out_dtype = jnp.float32 if li == n_layers - 1 else matmul_dtype
        y_fwd, y_bwd = bilstm_pallas(gx, whh_t, time_chunk=time_chunk, out_dtype=out_dtype,
                                     vmem_budget_bytes=vmem_budget_bytes)
        # TODO(synk): fuse the input projection into the kernel (stream (Tc,B,E) chunks and
        # compute gx in-kernel) to avoid materializing the 4x-wide gx tensor in HBM.
    # Single concatenate at the very end -> (T, B, 2H), matching nn.LSTM output layout.
    return jnp.concatenate([y_fwd, y_bwd], axis=-1)


# ----------------------------- Pure-JAX reference -------------------------------------------

def _ref_lstm_direction(x, w_ih, w_hh, b_ih, b_hh):
    H = w_hh.shape[1]
    B = x.shape[1]

    def step(carry, x_t):
        h, c = carry
        gates = x_t @ w_ih.T + h @ w_hh.T + b_ih + b_hh
        i = jax.nn.sigmoid(gates[:, :H])
        f = jax.nn.sigmoid(gates[:, H:2 * H])
        g = jnp.tanh(gates[:, 2 * H:3 * H])
        o = jax.nn.sigmoid(gates[:, 3 * H:])
        c = f * c + i * g
        h = o * jnp.tanh(c)
        return (h, c), h

    init = (jnp.zeros((B, H), jnp.float32), jnp.zeros((B, H), jnp.float32))
    _, ys = jax.lax.scan(step, init, x)
    return ys


def _ref_encoder_forward(params, tokens):
    h = params["embedding"][tokens]
    for layer in params["lstm"]:
        fwd = _ref_lstm_direction(h, *layer["fwd"])
        bwd = _ref_lstm_direction(h[::-1], *layer["bwd"])[::-1]
        h = jnp.concatenate([fwd, bwd], axis=-1)
    return h


# ----------------------------- Parameter init ------------------------------------------------

def init_params(key, vocab_size, embed_size, hidden_size, num_layers):
    n_keys = 1 + num_layers * 2 * 4
    keys = jax.random.split(key, n_keys)
    # nn.Embedding weight copied from (rand - 0.5) * 2  => uniform(-1, 1)
    emb = jax.random.uniform(keys[0], (vocab_size, embed_size), jnp.float32, -1.0, 1.0)
    k = 1.0 / float(jnp.sqrt(jnp.float32(hidden_size)))
    layers = []
    idx = 1
    for layer_i in range(num_layers):
        in_size = embed_size if layer_i == 0 else 2 * hidden_size
        layer = {}
        for d in ("fwd", "bwd"):
            w_ih = jax.random.uniform(keys[idx], (4 * hidden_size, in_size),
                                      jnp.float32, -k, k); idx += 1
            w_hh = jax.random.uniform(keys[idx], (4 * hidden_size, hidden_size),
                                      jnp.float32, -k, k); idx += 1
            b_ih = jax.random.uniform(keys[idx], (4 * hidden_size,),
                                      jnp.float32, -k, k); idx += 1
            b_hh = jax.random.uniform(keys[idx], (4 * hidden_size,),
                                      jnp.float32, -k, k); idx += 1
            layer[d] = (w_ih, w_hh, b_ih, b_hh)
        layers.append(layer)
    return {"embedding": emb, "lstm": layers}


# ----------------------------- Main -----------------------------------------------------------

if __name__ == "__main__":
    vocab_size, embed_size, hidden_size, num_layers = 50, 32, 32, 2
    T, B = 8, 2

    key = jax.random.PRNGKey(0)
    pkey, tkey = jax.random.split(key)
    params = init_params(pkey, vocab_size, embed_size, hidden_size, num_layers)
    tokens = jax.random.randint(tkey, (T, B), 0, vocab_size, dtype=jnp.int32)

    kparams = prepare_encoder_params(params)
    ref = jax.block_until_ready(_ref_encoder_forward(params, tokens))

    # 1) f32 path: validates the kernel math tightly.
    out_f32 = jax.jit(
        lambda p, t: encoder_forward(p, t, matmul_dtype=jnp.float32))(kparams, tokens)
    out_f32 = jax.block_until_ready(out_f32)
    assert out_f32.shape == (T, B, 2 * hidden_size), out_f32.shape
    assert jnp.allclose(out_f32, ref, atol=2e-3, rtol=2e-3), float(
        jnp.max(jnp.abs(out_f32 - ref)))

    # 2) default bf16 streaming path (the fast path): looser tolerance for bf16 gx / w_hh / y.
    out_bf16 = jax.block_until_ready(jax.jit(encoder_forward)(kparams, tokens))
    assert out_bf16.shape == (T, B, 2 * hidden_size), out_bf16.shape
    assert jnp.allclose(out_bf16, ref, atol=5e-2, rtol=5e-2), float(
        jnp.max(jnp.abs(out_bf16 - ref)))

    print("KERNEL_OK")
</pallas_src>

<mosaic_0001>
module attributes {stable_mosaic.version = 11 : i64} {
  func.func @_bilstm_kernel(%arg0: i32, %arg1: i32, %arg2: memref<1x8x8x128xf32, #tpu.memory_space<vmem>>, %arg3: memref<1x8x8x128xf32, #tpu.memory_space<vmem>>, %arg4: memref<2x32x128xf32, #tpu.memory_space<vmem>>, %arg5: memref<8x8x32xf32, #tpu.memory_space<vmem>>, %arg6: memref<8x8x32xf32, #tpu.memory_space<vmem>>, %arg7: memref<8x32xf32, #tpu.memory_space<vmem>>, %arg8: memref<8x32xf32, #tpu.memory_space<vmem>>, %arg9: memref<8x32xf32, #tpu.memory_space<vmem>>, %arg10: memref<8x32xf32, #tpu.memory_space<vmem>>) attributes {dimension_semantics = [#tpu.dimension_semantics<parallel>, #tpu.dimension_semantics<arbitrary>], iteration_bounds = array<i64: 1, 1>, scalar_prefetch = 0 : i64, scratch_operands = 4 : i64, tpu.core_type = #tpu.core_type<tc>, window_params = [{transform_indices = @transform_0, window_bounds = array<i64: 1, 8, 8, 128>}, {transform_indices = @transform_1, window_bounds = array<i64: 1, 8, 8, 128>}, {pipeline_mode = #tpu.pipeline_mode<synchronous>, transform_indices = @transform_2, window_bounds = array<i64: 2, 32, 128>}, {transform_indices = @transform_3, window_bounds = array<i64: 8, 8, 32>}, {transform_indices = @transform_4, window_bounds = array<i64: 8, 8, 32>}]} {
    %c0_i32 = arith.constant 0 : i32
    %0 = arith.cmpi eq, %arg1, %c0_i32 : i32
    %1 = arith.extui %0 : i1 to i32
    %c0_i32_0 = arith.constant 0 : i32
    %2 = arith.cmpi ne, %1, %c0_i32_0 : i32
    scf.if %2 {
      %cst_190 = arith.constant 0.000000e+00 : f32
      %527 = vector.broadcast %cst_190 : f32 to vector<8x32xf32>
      %c0_191 = arith.constant 0 : index
      %c0_192 = arith.constant 0 : index
      %528 = vector.load %arg7[%c0_191, %c0_192] : memref<8x32xf32, #tpu.memory_space<vmem>>, vector<8x32xf32>
      tpu.vector_store %arg7[%c0_191, %c0_192], %527 {strides = array<i32>} : memref<8x32xf32, #tpu.memory_space<vmem>>, vector<8x32xf32>,
      %cst_193 = arith.constant 0.000000e+00 : f32
      %529 = vector.broadcast %cst_193 : f32 to vector<8x32xf32>
      %c0_194 = arith.constant 0 : index
      %c0_195 = arith.constant 0 : index
      %530 = vector.load %arg8[%c0_194, %c0_195] : memref<8x32xf32, #tpu.memory_space<vmem>>, vector<8x32xf32>
      tpu.vector_store %arg8[%c0_194, %c0_195], %529 {strides = array<i32>} : memref<8x32xf32, #tpu.memory_space<vmem>>, vector<8x32xf32>,
      %cst_196 = arith.constant 0.000000e+00 : f32
      %531 = vector.broadcast %cst_196 : f32 to vector<8x32xf32>
      %c0_197 = arith.constant 0 : index
      %c0_198 = arith.constant 0 : index
      %532 = vector.load %arg9[%c0_197, %c0_198] : memref<8x32xf32, #tpu.memory_space<vmem>>, vector<8x32xf32>
      tpu.vector_store %arg9[%c0_197, %c0_198], %531 {strides = array<i32>} : memref<8x32xf32, #tpu.memory_space<vmem>>, vector<8x32xf32>,
      %cst_199 = arith.constant 0.000000e+00 : f32
      %533 = vector.broadcast %cst_199 : f32 to vector<8x32xf32>
      %c0_200 = arith.constant 0 : index
      %c0_201 = arith.constant 0 : index
      %534 = vector.load %arg10[%c0_200, %c0_201] : memref<8x32xf32, #tpu.memory_space<vmem>>, vector<8x32xf32>
      tpu.vector_store %arg10[%c0_200, %c0_201], %533 {strides = array<i32>} : memref<8x32xf32, #tpu.memory_space<vmem>>, vector<8x32xf32>,
    } else {
    }
    %c0 = arith.constant 0 : index
    %c0_1 = arith.constant 0 : index
    %c0_2 = arith.constant 0 : index
    %3 = vector.load %arg4[%c0, %c0_1, %c0_2] : memref<2x32x128xf32, #tpu.memory_space<vmem>>, vector<1x32x128xf32>
    %4 = vector.shape_cast %3 : vector<1x32x128xf32> to vector<32x128xf32>
    %c1 = arith.constant 1 : index
    %c0_3 = arith.constant 0 : index
    %c0_4 = arith.constant 0 : index
    %5 = vector.load %arg4[%c1, %c0_3, %c0_4] : memref<2x32x128xf32, #tpu.memory_space<vmem>>, vector<1x32x128xf32>
    %6 = vector.shape_cast %5 : vector<1x32x128xf32> to vector<32x128xf32>
    %c0_5 = arith.constant 0 : index
    %c0_6 = arith.constant 0 : index
    %7 = vector.load %arg7[%c0_5, %c0_6] : memref<8x32xf32, #tpu.memory_space<vmem>>, vector<8x32xf32>
    %c0_7 = arith.constant 0 : index
    %c0_8 = arith.constant 0 : index
    %8 = vector.load %arg8[%c0_7, %c0_8] : memref<8x32xf32, #tpu.memory_space<vmem>>, vector<8x32xf32>
    %c0_9 = arith.constant 0 : index
    %c0_10 = arith.constant 0 : index
    %9 = vector.load %arg9[%c0_9, %c0_10] : memref<8x32xf32, #tpu.memory_space<vmem>>, vector<8x32xf32>
    %c0_11 = arith.constant 0 : index
    %c0_12 = arith.constant 0 : index
    %10 = vector.load %arg10[%c0_11, %c0_12] : memref<8x32xf32, #tpu.memory_space<vmem>>, vector<8x32xf32>
    %cst = arith.constant dense<0.000000e+00> : vector<8x128xf32>
    %11 = tpu.matmul %7, %4, %cst {dimension_numbers = #tpu.dot_dimension_numbers<[1], [0], [0], [1], [0, 0, 1, 1], [], []>} : vector<8x32xf32>, vector<32x128xf32>, vector<8x128xf32> -> vector<8x128xf32>
    %cst_13 = arith.constant dense<0.000000e+00> : vector<8x128xf32>
    %12 = tpu.matmul %9, %6, %cst_13 {dimension_numbers = #tpu.dot_dimension_numbers<[1], [0], [0], [1], [0, 0, 1, 1], [], []>} : vector<8x32xf32>, vector<32x128xf32>, vector<8x128xf32> -> vector<8x128xf32>
    %c0_14 = arith.constant 0 : index
    %c0_15 = arith.constant 0 : index
    %c0_16 = arith.constant 0 : index
    %c0_17 = arith.constant 0 : index
    %13 = vector.load %arg2[%c0_14, %c0_15, %c0_16, %c0_17] : memref<1x8x8x128xf32, #tpu.memory_space<vmem>>, vector<1x1x8x128xf32>
    %14 = vector.shape_cast %13 : vector<1x1x8x128xf32> to vector<8x128xf32>
    %15 = arith.addf %14, %11 : vector<8x128xf32>
    %16 = vector.extract_strided_slice %15 {offsets = [0, 0], sizes = [8, 32], strides = [1, 1]} : vector<8x128xf32> to vector<8x32xf32>
    %17 = arith.negf %16 : vector<8x32xf32>
    %18 = math.exp %17 : vector<8x32xf32>
    %cst_18 = arith.constant 1.000000e+00 : f32
    %19 = vector.broadcast %cst_18 : f32 to vector<8x32xf32>
    %20 = arith.addf %19, %18 : vector<8x32xf32>
    %21 = arith.divf %19, %20 : vector<8x32xf32>
    %22 = vector.extract_strided_slice %15 {offsets = [0, 32], sizes = [8, 32], strides = [1, 1]} : vector<8x128xf32> to vector<8x32xf32>
    %23 = arith.negf %22 : vector<8x32xf32>
    %24 = math.exp %23 : vector<8x32xf32>
    %cst_19 = arith.constant 1.000000e+00 : f32
    %25 = vector.broadcast %cst_19 : f32 to vector<8x32xf32>
    %26 = arith.addf %25, %24 : vector<8x32xf32>
    %27 = arith.divf %25, %26 : vector<8x32xf32>
    %28 = vector.extract_strided_slice %15 {offsets = [0, 64], sizes = [8, 32], strides = [1, 1]} : vector<8x128xf32> to vector<8x32xf32>
    %29 = math.tanh %28 : vector<8x32xf32>
    %30 = vector.extract_strided_slice %15 {offsets = [0, 96], sizes = [8, 32], strides = [1, 1]} : vector<8x128xf32> to vector<8x32xf32>
    %31 = arith.negf %30 : vector<8x32xf32>
    %32 = math.exp %31 : vector<8x32xf32>
    %cst_20 = arith.constant 1.000000e+00 : f32
    %33 = vector.broadcast %cst_20 : f32 to vector<8x32xf32>
    %34 = arith.addf %33, %32 : vector<8x32xf32>
    %35 = arith.divf %33, %34 : vector<8x32xf32>
    %36 = arith.mulf %27, %8 : vector<8x32xf32>
    %37 = arith.mulf %21, %29 : vector<8x32xf32>
    %38 = arith.addf %36, %37 : vector<8x32xf32>
    %39 = math.tanh %38 : vector<8x32xf32>
    %40 = arith.mulf %35, %39 : vector<8x32xf32>
    %c0_21 = arith.constant 0 : index
    %c7 = arith.constant 7 : index
    %c0_22 = arith.constant 0 : index
    %c0_23 = arith.constant 0 : index
    %41 = vector.load %arg3[%c0_21, %c7, %c0_22, %c0_23] : memref<1x8x8x128xf32, #tpu.memory_space<vmem>>, vector<1x1x8x128xf32>
    %42 = vector.shape_cast %41 : vector<1x1x8x128xf32> to vector<8x128xf32>
    %43 = arith.addf %42, %12 : vector<8x128xf32>
    %44 = vector.extract_strided_slice %43 {offsets = [0, 0], sizes = [8, 32], strides = [1, 1]} : vector<8x128xf32> to vector<8x32xf32>
    %45 = arith.negf %44 : vector<8x32xf32>
    %46 = math.exp %45 : vector<8x32xf32>
    %cst_24 = arith.constant 1.000000e+00 : f32
    %47 = vector.broadcast %cst_24 : f32 to vector<8x32xf32>
    %48 = arith.addf %47, %46 : vector<8x32xf32>
    %49 = arith.divf %47, %48 : vector<8x32xf32>
    %50 = vector.extract_strided_slice %43 {offsets = [0, 32], sizes = [8, 32], strides = [1, 1]} : vector<8x128xf32> to vector<8x32xf32>
    %51 = arith.negf %50 : vector<8x32xf32>
    %52 = math.exp %51 : vector<8x32xf32>
    %cst_25 = arith.constant 1.000000e+00 : f32
    %53 = vector.broadcast %cst_25 : f32 to vector<8x32xf32>
    %54 = arith.addf %53, %52 : vector<8x32xf32>
    %55 = arith.divf %53, %54 : vector<8x32xf32>
    %56 = vector.extract_strided_slice %43 {offsets = [0, 64], sizes = [8, 32], strides = [1, 1]} : vector<8x128xf32> to vector<8x32xf32>
    %57 = math.tanh %56 : vector<8x32xf32>
    %58 = vector.extract_strided_slice %43 {offsets = [0, 96], sizes = [8, 32], strides = [1, 1]} : vector<8x128xf32> to vector<8x32xf32>
    %59 = arith.negf %58 : vector<8x32xf32>
    %60 = math.exp %59 : vector<8x32xf32>
    %cst_26 = arith.constant 1.000000e+00 : f32
    %61 = vector.broadcast %cst_26 : f32 to vector<8x32xf32>
    %62 = arith.addf %61, %60 : vector<8x32xf32>
    %63 = arith.divf %61, %62 : vector<8x32xf32>
    %64 = arith.mulf %55, %10 : vector<8x32xf32>
    %65 = arith.mulf %49, %57 : vector<8x32xf32>
    %66 = arith.addf %64, %65 : vector<8x32xf32>
    %67 = math.tanh %66 : vector<8x32xf32>
    %68 = arith.mulf %63, %67 : vector<8x32xf32>
    %c0_27 = arith.constant 0 : index
    %c0_28 = arith.constant 0 : index
    %c0_29 = arith.constant 0 : index
    %69 = vector.load %arg5[%c0_27, %c0_28, %c0_29] : memref<8x8x32xf32, #tpu.memory_space<vmem>>, vector<1x8x32xf32>
    %70 = vector.shape_cast %69 : vector<1x8x32xf32> to vector<8x32xf32>
    %71 = vector.shape_cast %40 : vector<8x32xf32> to vector<1x8x32xf32>
    tpu.vector_store %arg5[%c0_27, %c0_28, %c0_29], %71 {strides = array<i32>} : memref<8x8x32xf32, #tpu.memory_space<vmem>>, vector<1x8x32xf32>,
    %c7_30 = arith.constant 7 : index
    %c0_31 = arith.constant 0 : index
    %c0_32 = arith.constant 0 : index
    %72 = vector.load %arg6[%c7_30, %c0_31, %c0_32] : memref<8x8x32xf32, #tpu.memory_space<vmem>>, vector<1x8x32xf32>
    %73 = vector.shape_cast %72 : vector<1x8x32xf32> to vector<8x32xf32>
    %74 = vector.shape_cast %68 : vector<8x32xf32> to vector<1x8x32xf32>
    tpu.vector_store %arg6[%c7_30, %c0_31, %c0_32], %74 {strides = array<i32>} : memref<8x8x32xf32, #tpu.memory_space<vmem>>, vector<1x8x32xf32>,
    %cst_33 = arith.constant dense<0.000000e+00> : vector<8x128xf32>
    %75 = tpu.matmul %40, %4, %cst_33 {dimension_numbers = #tpu.dot_dimension_numbers<[1], [0], [0], [1], [0, 0, 1, 1], [], []>} : vector<8x32xf32>, vector<32x128xf32>, vector<8x128xf32> -> vector<8x128xf32>
    %cst_34 = arith.constant dense<0.000000e+00> : vector<8x128xf32>
    %76 = tpu.matmul %68, %6, %cst_34 {dimension_numbers = #tpu.dot_dimension_numbers<[1], [0], [0], [1], [0, 0, 1, 1], [], []>} : vector<8x32xf32>, vector<32x128xf32>, vector<8x128xf32> -> vector<8x128xf32>
    %c0_35 = arith.constant 0 : index
    %c1_36 = arith.constant 1 : index
    %c0_37 = arith.constant 0 : index
    %c0_38 = arith.constant 0 : index
    %77 = vector.load %arg2[%c0_35, %c1_36, %c0_37, %c0_38] : memref<1x8x8x128xf32, #tpu.memory_space<vmem>>, vector<1x1x8x128xf32>
    %78 = vector.shape_cast %77 : vector<1x1x8x128xf32> to vector<8x128xf32>
    %79 = arith.addf %78, %75 : vector<8x128xf32>
    %80 = vector.extract_strided_slice %79 {offsets = [0, 0], sizes = [8, 32], strides = [1, 1]} : vector<8x128xf32> to vector<8x32xf32>
    %81 = arith.negf %80 : vector<8x32xf32>
    %82 = math.exp %81 : vector<8x32xf32>
    %cst_39 = arith.constant 1.000000e+00 : f32
    %83 = vector.broadcast %cst_39 : f32 to vector<8x32xf32>
    %84 = arith.addf %83, %82 : vector<8x32xf32>
    %85 = arith.divf %83, %84 : vector<8x32xf32>
    %86 = vector.extract_strided_slice %79 {offsets = [0, 32], sizes = [8, 32], strides = [1, 1]} : vector<8x128xf32> to vector<8x32xf32>
    %87 = arith.negf %86 : vector<8x32xf32>
    %88 = math.exp %87 : vector<8x32xf32>
    %cst_40 = arith.constant 1.000000e+00 : f32
    %89 = vector.broadcast %cst_40 : f32 to vector<8x32xf32>
    %90 = arith.addf %89, %88 : vector<8x32xf32>
    %91 = arith.divf %89, %90 : vector<8x32xf32>
    %92 = vector.extract_strided_slice %79 {offsets = [0, 64], sizes = [8, 32], strides = [1, 1]} : vector<8x128xf32> to vector<8x32xf32>
    %93 = math.tanh %92 : vector<8x32xf32>
    %94 = vector.extract_strided_slice %79 {offsets = [0, 96], sizes = [8, 32], strides = [1, 1]} : vector<8x128xf32> to vector<8x32xf32>
    %95 = arith.negf %94 : vector<8x32xf32>
    %96 = math.exp %95 : vector<8x32xf32>
    %cst_41 = arith.constant 1.000000e+00 : f32
    %97 = vector.broadcast %cst_41 : f32 to vector<8x32xf32>
    %98 = arith.addf %97, %96 : vector<8x32xf32>
    %99 = arith.divf %97, %98 : vector<8x32xf32>
    %100 = arith.mulf %91, %38 : vector<8x32xf32>
    %101 = arith.mulf %85, %93 : vector<8x32xf32>
    %102 = arith.addf %100, %101 : vector<8x32xf32>
    %103 = math.tanh %102 : vector<8x32xf32>
    %104 = arith.mulf %99, %103 : vector<8x32xf32>
    %c0_42 = arith.constant 0 : index
    %c6 = arith.constant 6 : index
    %c0_43 = arith.constant 0 : index
    %c0_44 = arith.constant 0 : index
    %105 = vector.load %arg3[%c0_42, %c6, %c0_43, %c0_44] : memref<1x8x8x128xf32, #tpu.memory_space<vmem>>, vector<1x1x8x128xf32>
    %106 = vector.shape_cast %105 : vector<1x1x8x128xf32> to vector<8x128xf32>
    %107 = arith.addf %106, %76 : vector<8x128xf32>
    %108 = vector.extract_strided_slice %107 {offsets = [0, 0], sizes = [8, 32], strides = [1, 1]} : vector<8x128xf32> to vector<8x32xf32>
    %109 = arith.negf %108 : vector<8x32xf32>
    %110 = math.exp %109 : vector<8x32xf32>
    %cst_45 = arith.constant 1.000000e+00 : f32
    %111 = vector.broadcast %cst_45 : f32 to vector<8x32xf32>
    %112 = arith.addf %111, %110 : vector<8x32xf32>
    %113 = arith.divf %111, %112 : vector<8x32xf32>
    %114 = vector.extract_strided_slice %107 {offsets = [0, 32], sizes = [8, 32], strides = [1, 1]} : vector<8x128xf32> to vector<8x32xf32>
    %115 = arith.negf %114 : vector<8x32xf32>
    %116 = math.exp %115 : vector<8x32xf32>
    %cst_46 = arith.constant 1.000000e+00 : f32
    %117 = vector.broadcast %cst_46 : f32 to vector<8x32xf32>
    %118 = arith.addf %117, %116 : vector<8x32xf32>
    %119 = arith.divf %117, %118 : vector<8x32xf32>
    %120 = vector.extract_strided_slice %107 {offsets = [0, 64], sizes = [8, 32], strides = [1, 1]} : vector<8x128xf32> to vector<8x32xf32>
    %121 = math.tanh %120 : vector<8x32xf32>
    %122 = vector.extract_strided_slice %107 {offsets = [0, 96], sizes = [8, 32], strides = [1, 1]} : vector<8x128xf32> to vector<8x32xf32>
    %123 = arith.negf %122 : vector<8x32xf32>
    %124 = math.exp %123 : vector<8x32xf32>
    %cst_47 = arith.constant 1.000000e+00 : f32
    %125 = vector.broadcast %cst_47 : f32 to vector<8x32xf32>
    %126 = arith.addf %125, %124 : vector<8x32xf32>
    %127 = arith.divf %125, %126 : vector<8x32xf32>
    %128 = arith.mulf %119, %66 : vector<8x32xf32>
    %129 = arith.mulf %113, %121 : vector<8x32xf32>
    %130 = arith.addf %128, %129 : vector<8x32xf32>
    %131 = math.tanh %130 : vector<8x32xf32>
    %132 = arith.mulf %127, %131 : vector<8x32xf32>
    %c1_48 = arith.constant 1 : index
    %c0_49 = arith.constant 0 : index
    %c0_50 = arith.constant 0 : index
    %133 = vector.load %arg5[%c1_48, %c0_49, %c0_50] : memref<8x8x32xf32, #tpu.memory_space<vmem>>, vector<1x8x32xf32>
    %134 = vector.shape_cast %133 : vector<1x8x32xf32> to vector<8x32xf32>
    %135 = vector.shape_cast %104 : vector<8x32xf32> to vector<1x8x32xf32>
    tpu.vector_store %arg5[%c1_48, %c0_49, %c0_50], %135 {strides = array<i32>} : memref<8x8x32xf32, #tpu.memory_space<vmem>>, vector<1x8x32xf32>,
    %c6_51 = arith.constant 6 : index
    %c0_52 = arith.constant 0 : index
    %c0_53 = arith.constant 0 : index
    %136 = vector.load %arg6[%c6_51, %c0_52, %c0_53] : memref<8x8x32xf32, #tpu.memory_space<vmem>>, vector<1x8x32xf32>
    %137 = vector.shape_cast %136 : vector<1x8x32xf32> to vector<8x32xf32>
    %138 = vector.shape_cast %132 : vector<8x32xf32> to vector<1x8x32xf32>
    tpu.vector_store %arg6[%c6_51, %c0_52, %c0_53], %138 {strides = array<i32>} : memref<8x8x32xf32, #tpu.memory_space<vmem>>, vector<1x8x32xf32>,
    %cst_54 = arith.constant dense<0.000000e+00> : vector<8x128xf32>
    %139 = tpu.matmul %104, %4, %cst_54 {dimension_numbers = #tpu.dot_dimension_numbers<[1], [0], [0], [1], [0, 0, 1, 1], [], []>} : vector<8x32xf32>, vector<32x128xf32>, vector<8x128xf32> -> vector<8x128xf32>
    %cst_55 = arith.constant dense<0.000000e+00> : vector<8x128xf32>
    %140 = tpu.matmul %132, %6, %cst_55 {dimension_numbers = #tpu.dot_dimension_numbers<[1], [0], [0], [1], [0, 0, 1, 1], [], []>} : vector<8x32xf32>, vector<32x128xf32>, vector<8x128xf32> -> vector<8x128xf32>
    %c0_56 = arith.constant 0 : index
    %c2 = arith.constant 2 : index
    %c0_57 = arith.constant 0 : index
    %c0_58 = arith.constant 0 : index
    %141 = vector.load %arg2[%c0_56, %c2, %c0_57, %c0_58] : memref<1x8x8x128xf32, #tpu.memory_space<vmem>>, vector<1x1x8x128xf32>
    %142 = vector.shape_cast %141 : vector<1x1x8x128xf32> to vector<8x128xf32>
    %143 = arith.addf %142, %139 : vector<8x128xf32>
    %144 = vector.extract_strided_slice %143 {offsets = [0, 0], sizes = [8, 32], strides = [1, 1]} : vector<8x128xf32> to vector<8x32xf32>
    %145 = arith.negf %144 : vector<8x32xf32>
    %146 = math.exp %145 : vector<8x32xf32>
    %cst_59 = arith.constant 1.000000e+00 : f32
    %147 = vector.broadcast %cst_59 : f32 to vector<8x32xf32>
    %148 = arith.addf %147, %146 : vector<8x32xf32>
    %149 = arith.divf %147, %148 : vector<8x32xf32>
    %150 = vector.extract_strided_slice %143 {offsets = [0, 32], sizes = [8, 32], strides = [1, 1]} : vector<8x128xf32> to vector<8x32xf32>
    %151 = arith.negf %150 : vector<8x32xf32>
    %152 = math.exp %151 : vector<8x32xf32>
    %cst_60 = arith.constant 1.000000e+00 : f32
    %153 = vector.broadcast %cst_60 : f32 to vector<8x32xf32>
    %154 = arith.addf %153, %152 : vector<8x32xf32>
    %155 = arith.divf %153, %154 : vector<8x32xf32>
    %156 = vector.extract_strided_slice %143 {offsets = [0, 64], sizes = [8, 32], strides = [1, 1]} : vector<8x128xf32> to vector<8x32xf32>
    %157 = math.tanh %156 : vector<8x32xf32>
    %158 = vector.extract_strided_slice %143 {offsets = [0, 96], sizes = [8, 32], strides = [1, 1]} : vector<8x128xf32> to vector<8x32xf32>
    %159 = arith.negf %158 : vector<8x32xf32>
    %160 = math.exp %159 : vector<8x32xf32>
    %cst_61 = arith.constant 1.000000e+00 : f32
    %161 = vector.broadcast %cst_61 : f32 to vector<8x32xf32>
    %162 = arith.addf %161, %160 : vector<8x32xf32>
    %163 = arith.divf %161, %162 : vector<8x32xf32>
    %164 = arith.mulf %155, %102 : vector<8x32xf32>
    %165 = arith.mulf %149, %157 : vector<8x32xf32>
    %166 = arith.addf %164, %165 : vector<8x32xf32>
    %167 = math.tanh %166 : vector<8x32xf32>
    %168 = arith.mulf %163, %167 : vector<8x32xf32>
    %c0_62 = arith.constant 0 : index
    %c5 = arith.constant 5 : index
    %c0_63 = arith.constant 0 : index
    %c0_64 = arith.constant 0 : index
    %169 = vector.load %arg3[%c0_62, %c5, %c0_63, %c0_64] : memref<1x8x8x128xf32, #tpu.memory_space<vmem>>, vector<1x1x8x128xf32>
    %170 = vector.shape_cast %169 : vector<1x1x8x128xf32> to vector<8x128xf32>
    %171 = arith.addf %170, %140 : vector<8x128xf32>
    %172 = vector.extract_strided_slice %171 {offsets = [0, 0], sizes = [8, 32], strides = [1, 1]} : vector<8x128xf32> to vector<8x32xf32>
    %173 = arith.negf %172 : vector<8x32xf32>
    %174 = math.exp %173 : vector<8x32xf32>
    %cst_65 = arith.constant 1.000000e+00 : f32
    %175 = vector.broadcast %cst_65 : f32 to vector<8x32xf32>
    %176 = arith.addf %175, %174 : vector<8x32xf32>
    %177 = arith.divf %175, %176 : vector<8x32xf32>
    %178 = vector.extract_strided_slice %171 {offsets = [0, 32], sizes = [8, 32], strides = [1, 1]} : vector<8x128xf32> to vector<8x32xf32>
    %179 = arith.negf %178 : vector<8x32xf32>
    %180 = math.exp %179 : vector<8x32xf32>
    %cst_66 = arith.constant 1.000000e+00 : f32
    %181 = vector.broadcast %cst_66 : f32 to vector<8x32xf32>
    %182 = arith.addf %181, %180 : vector<8x32xf32>
    %183 = arith.divf %181, %182 : vector<8x32xf32>
    %184 = vector.extract_strided_slice %171 {offsets = [0, 64], sizes = [8, 32], strides = [1, 1]} : vector<8x128xf32> to vector<8x32xf32>
    %185 = math.tanh %184 : vector<8x32xf32>
    %186 = vector.extract_strided_slice %171 {offsets = [0, 96], sizes = [8, 32], strides = [1, 1]} : vector<8x128xf32> to vector<8x32xf32>
    %187 = arith.negf %186 : vector<8x32xf32>
    %188 = math.exp %187 : vector<8x32xf32>
    %cst_67 = arith.constant 1.000000e+00 : f32
    %189 = vector.broadcast %cst_67 : f32 to vector<8x32xf32>
    %190 = arith.addf %189, %188 : vector<8x32xf32>
    %191 = arith.divf %189, %190 : vector<8x32xf32>
    %192 = arith.mulf %183, %130 : vector<8x32xf32>
    %193 = arith.mulf %177, %185 : vector<8x32xf32>
    %194 = arith.addf %192, %193 : vector<8x32xf32>
    %195 = math.tanh %194 : vector<8x32xf32>
    %196 = arith.mulf %191, %195 : vector<8x32xf32>
    %c2_68 = arith.constant 2 : index
    %c0_69 = arith.constant 0 : index
    %c0_70 = arith.constant 0 : index
    %197 = vector.load %arg5[%c2_68, %c0_69, %c0_70] : memref<8x8x32xf32, #tpu.memory_space<vmem>>, vector<1x8x32xf32>
    %198 = vector.shape_cast %197 : vector<1x8x32xf32> to vector<8x32xf32>
    %199 = vector.shape_cast %168 : vector<8x32xf32> to vector<1x8x32xf32>
    tpu.vector_store %arg5[%c2_68, %c0_69, %c0_70], %199 {strides = array<i32>} : memref<8x8x32xf32, #tpu.memory_space<vmem>>, vector<1x8x32xf32>,
    %c5_71 = arith.constant 5 : index
    %c0_72 = arith.constant 0 : index
    %c0_73 = arith.constant 0 : index
    %200 = vector.load %arg6[%c5_71, %c0_72, %c0_73] : memref<8x8x32xf32, #tpu.memory_space<vmem>>, vector<1x8x32xf32>
    %201 = vector.shape_cast %200 : vector<1x8x32xf32> to vector<8x32xf32>
    %202 = vector.shape_cast %196 : vector<8x32xf32> to vector<1x8x32xf32>
    tpu.vector_store %arg6[%c5_71, %c0_72, %c0_73], %202 {strides = array<i32>} : memref<8x8x32xf32, #tpu.memory_space<vmem>>, vector<1x8x32xf32>,
    %cst_74 = arith.constant dense<0.000000e+00> : vector<8x128xf32>
    %203 = tpu.matmul %168, %4, %cst_74 {dimension_numbers = #tpu.dot_dimension_numbers<[1], [0], [0], [1], [0, 0, 1, 1], [], []>} : vector<8x32xf32>, vector<32x128xf32>, vector<8x128xf32> -> vector<8x128xf32>
    %cst_75 = arith.constant dense<0.000000e+00> : vector<8x128xf32>
    %204 = tpu.matmul %196, %6, %cst_75 {dimension_numbers = #tpu.dot_dimension_numbers<[1], [0], [0], [1], [0, 0, 1, 1], [], []>} : vector<8x32xf32>, vector<32x128xf32>, vector<8x128xf32> -> vector<8x128xf32>
    %c0_76 = arith.constant 0 : index
    %c3 = arith.constant 3 : index
    %c0_77 = arith.constant 0 : index
    %c0_78 = arith.constant 0 : index
    %205 = vector.load %arg2[%c0_76, %c3, %c0_77, %c0_78] : memref<1x8x8x128xf32, #tpu.memory_space<vmem>>, vector<1x1x8x128xf32>
    %206 = vector.shape_cast %205 : vector<1x1x8x128xf32> to vector<8x128xf32>
    %207 = arith.addf %206, %203 : vector<8x128xf32>
    %208 = vector.extract_strided_slice %207 {offsets = [0, 0], sizes = [8, 32], strides = [1, 1]} : vector<8x128xf32> to vector<8x32xf32>
    %209 = arith.negf %208 : vector<8x32xf32>
    %210 = math.exp %209 : vector<8x32xf32>
    %cst_79 = arith.constant 1.000000e+00 : f32
    %211 = vector.broadcast %cst_79 : f32 to vector<8x32xf32>
    %212 = arith.addf %211, %210 : vector<8x32xf32>
    %213 = arith.divf %211, %212 : vector<8x32xf32>
    %214 = vector.extract_strided_slice %207 {offsets = [0, 32], sizes = [8, 32], strides = [1, 1]} : vector<8x128xf32> to vector<8x32xf32>
    %215 = arith.negf %214 : vector<8x32xf32>
    %216 = math.exp %215 : vector<8x32xf32>
    %cst_80 = arith.constant 1.000000e+00 : f32
    %217 = vector.broadcast %cst_80 : f32 to vector<8x32xf32>
    %218 = arith.addf %217, %216 : vector<8x32xf32>
    %219 = arith.divf %217, %218 : vector<8x32xf32>
    %220 = vector.extract_strided_slice %207 {offsets = [0, 64], sizes = [8, 32], strides = [1, 1]} : vector<8x128xf32> to vector<8x32xf32>
    %221 = math.tanh %220 : vector<8x32xf32>
    %222 = vector.extract_strided_slice %207 {offsets = [0, 96], sizes = [8, 32], strides = [1, 1]} : vector<8x128xf32> to vector<8x32xf32>
    %223 = arith.negf %222 : vector<8x32xf32>
    %224 = math.exp %223 : vector<8x32xf32>
    %cst_81 = arith.constant 1.000000e+00 : f32
    %225 = vector.broadcast %cst_81 : f32 to vector<8x32xf32>
    %226 = arith.addf %225, %224 : vector<8x32xf32>
    %227 = arith.divf %225, %226 : vector<8x32xf32>
    %228 = arith.mulf %219, %166 : vector<8x32xf32>
    %229 = arith.mulf %213, %221 : vector<8x32xf32>
    %230 = arith.addf %228, %229 : vector<8x32xf32>
    %231 = math.tanh %230 : vector<8x32xf32>
    %232 = arith.mulf %227, %231 : vector<8x32xf32>
    %c0_82 = arith.constant 0 : index
    %c4 = arith.constant 4 : index
    %c0_83 = arith.constant 0 : index
    %c0_84 = arith.constant 0 : index
    %233 = vector.load %arg3[%c0_82, %c4, %c0_83, %c0_84] : memref<1x8x8x128xf32, #tpu.memory_space<vmem>>, vector<1x1x8x128xf32>
    %234 = vector.shape_cast %233 : vector<1x1x8x128xf32> to vector<8x128xf32>
    %235 = arith.addf %234, %204 : vector<8x128xf32>
    %236 = vector.extract_strided_slice %235 {offsets = [0, 0], sizes = [8, 32], strides = [1, 1]} : vector<8x128xf32> to vector<8x32xf32>
    %237 = arith.negf %236 : vector<8x32xf32>
    %238 = math.exp %237 : vector<8x32xf32>
    %cst_85 = arith.constant 1.000000e+00 : f32
    %239 = vector.broadcast %cst_85 : f32 to vector<8x32xf32>
    %240 = arith.addf %239, %238 : vector<8x32xf32>
    %241 = arith.divf %239, %240 : vector<8x32xf32>
    %242 = vector.extract_strided_slice %235 {offsets = [0, 32], sizes = [8, 32], strides = [1, 1]} : vector<8x128xf32> to vector<8x32xf32>
    %243 = arith.negf %242 : vector<8x32xf32>
    %244 = math.exp %243 : vector<8x32xf32>
    %cst_86 = arith.constant 1.000000e+00 : f32
    %245 = vector.broadcast %cst_86 : f32 to vector<8x32xf32>
    %246 = arith.addf %245, %244 : vector<8x32xf32>
    %247 = arith.divf %245, %246 : vector<8x32xf32>
    %248 = vector.extract_strided_slice %235 {offsets = [0, 64], sizes = [8, 32], strides = [1, 1]} : vector<8x128xf32> to vector<8x32xf32>
    %249 = math.tanh %248 : vector<8x32xf32>
    %250 = vector.extract_strided_slice %235 {offsets = [0, 96], sizes = [8, 32], strides = [1, 1]} : vector<8x128xf32> to vector<8x32xf32>
    %251 = arith.negf %250 : vector<8x32xf32>
    %252 = math.exp %251 : vector<8x32xf32>
    %cst_87 = arith.constant 1.000000e+00 : f32
    %253 = vector.broadcast %cst_87 : f32 to vector<8x32xf32>
    %254 = arith.addf %253, %252 : vector<8x32xf32>
    %255 = arith.divf %253, %254 : vector<8x32xf32>
    %256 = arith.mulf %247, %194 : vector<8x32xf32>
    %257 = arith.mulf %241, %249 : vector<8x32xf32>
    %258 = arith.addf %256, %257 : vector<8x32xf32>
    %259 = math.tanh %258 : vector<8x32xf32>
    %260 = arith.mulf %255, %259 : vector<8x32xf32>
    %c3_88 = arith.constant 3 : index
    %c0_89 = arith.constant 0 : index
    %c0_90 = arith.constant 0 : index
    %261 = vector.load %arg5[%c3_88, %c0_89, %c0_90] : memref<8x8x32xf32, #tpu.memory_space<vmem>>, vector<1x8x32xf32>
    %262 = vector.shape_cast %261 : vector<1x8x32xf32> to vector<8x32xf32>
    %263 = vector.shape_cast %232 : vector<8x32xf32> to vector<1x8x32xf32>
    tpu.vector_store %arg5[%c3_88, %c0_89, %c0_90], %263 {strides = array<i32>} : memref<8x8x32xf32, #tpu.memory_space<vmem>>, vector<1x8x32xf32>,
    %c4_91 = arith.constant 4 : index
    %c0_92 = arith.constant 0 : index
    %c0_93 = arith.constant 0 : index
    %264 = vector.load %arg6[%c4_91, %c0_92, %c0_93] : memref<8x8x32xf32, #tpu.memory_space<vmem>>, vector<1x8x32xf32>
    %265 = vector.shape_cast %264 : vector<1x8x32xf32> to vector<8x32xf32>
    %266 = vector.shape_cast %260 : vector<8x32xf32> to vector<1x8x32xf32>
    tpu.vector_store %arg6[%c4_91, %c0_92, %c0_93], %266 {strides = array<i32>} : memref<8x8x32xf32, #tpu.memory_space<vmem>>, vector<1x8x32xf32>,
    %cst_94 = arith.constant dense<0.000000e+00> : vector<8x128xf32>
    %267 = tpu.matmul %232, %4, %cst_94 {dimension_numbers = #tpu.dot_dimension_numbers<[1], [0], [0], [1], [0, 0, 1, 1], [], []>} : vector<8x32xf32>, vector<32x128xf32>, vector<8x128xf32> -> vector<8x128xf32>
    %cst_95 = arith.constant dense<0.000000e+00> : vector<8x128xf32>
    %268 = tpu.matmul %260, %6, %cst_95 {dimension_numbers = #tpu.dot_dimension_numbers<[1], [0], [0], [1], [0, 0, 1, 1], [], []>} : vector<8x32xf32>, vector<32x128xf32>, vector<8x128xf32> -> vector<8x128xf32>
    %c0_96 = arith.constant 0 : index
    %c4_97 = arith.constant 4 : index
    %c0_98 = arith.constant 0 : index
    %c0_99 = arith.constant 0 : index
    %269 = vector.load %arg2[%c0_96, %c4_97, %c0_98, %c0_99] : memref<1x8x8x128xf32, #tpu.memory_space<vmem>>, vector<1x1x8x128xf32>
    %270 = vector.shape_cast %269 : vector<1x1x8x128xf32> to vector<8x128xf32>
    %271 = arith.addf %270, %267 : vector<8x128xf32>
    %272 = vector.extract_strided_slice %271 {offsets = [0, 0], sizes = [8, 32], strides = [1, 1]} : vector<8x128xf32> to vector<8x32xf32>
    %273 = arith.negf %272 : vector<8x32xf32>
    %274 = math.exp %273 : vector<8x32xf32>
    %cst_100 = arith.constant 1.000000e+00 : f32
    %275 = vector.broadcast %cst_100 : f32 to vector<8x32xf32>
    %276 = arith.addf %275, %274 : vector<8x32xf32>
    %277 = arith.divf %275, %276 : vector<8x32xf32>
    %278 = vector.extract_strided_slice %271 {offsets = [0, 32], sizes = [8, 32], strides = [1, 1]} : vector<8x128xf32> to vector<8x32xf32>
    %279 = arith.negf %278 : vector<8x32xf32>
    %280 = math.exp %279 : vector<8x32xf32>
    %cst_101 = arith.constant 1.000000e+00 : f32
    %281 = vector.broadcast %cst_101 : f32 to vector<8x32xf32>
    %282 = arith.addf %281, %280 : vector<8x32xf32>
    %283 = arith.divf %281, %282 : vector<8x32xf32>
    %284 = vector.extract_strided_slice %271 {offsets = [0, 64], sizes = [8, 32], strides = [1, 1]} : vector<8x128xf32> to vector<8x32xf32>
    %285 = math.tanh %284 : vector<8x32xf32>
    %286 = vector.extract_strided_slice %271 {offsets = [0, 96], sizes = [8, 32], strides = [1, 1]} : vector<8x128xf32> to vector<8x32xf32>
    %287 = arith.negf %286 : vector<8x32xf32>
    %288 = math.exp %287 : vector<8x32xf32>
    %cst_102 = arith.constant 1.000000e+00 : f32
    %289 = vector.broadcast %cst_102 : f32 to vector<8x32xf32>
    %290 = arith.addf %289, %288 : vector<8x32xf32>
    %291 = arith.divf %289, %290 : vector<8x32xf32>
    %292 = arith.mulf %283, %230 : vector<8x32xf32>
    %293 = arith.mulf %277, %285 : vector<8x32xf32>
    %294 = arith.addf %292, %293 : vector<8x32xf32>
    %295 = math.tanh %294 : vector<8x32xf32>
    %296 = arith.mulf %291, %295 : vector<8x32xf32>
    %c0_103 = arith.constant 0 : index
    %c3_104 = arith.constant 3 : index
    %c0_105 = arith.constant 0 : index
    %c0_106 = arith.constant 0 : index
    %297 = vector.load %arg3[%c0_103, %c3_104, %c0_105, %c0_106] : memref<1x8x8x128xf32, #tpu.memory_space<vmem>>, vector<1x1x8x128xf32>
    %298 = vector.shape_cast %297 : vector<1x1x8x128xf32> to vector<8x128xf32>
    %299 = arith.addf %298, %268 : vector<8x128xf32>
    %300 = vector.extract_strided_slice %299 {offsets = [0, 0], sizes = [8, 32], strides = [1, 1]} : vector<8x128xf32> to vector<8x32xf32>
    %301 = arith.negf %300 : vector<8x32xf32>
    %302 = math.exp %301 : vector<8x32xf32>
    %cst_107 = arith.constant 1.000000e+00 : f32
    %303 = vector.broadcast %cst_107 : f32 to vector<8x32xf32>
    %304 = arith.addf %303, %302 : vector<8x32xf32>
    %305 = arith.divf %303, %304 : vector<8x32xf32>
    %306 = vector.extract_strided_slice %299 {offsets = [0, 32], sizes = [8, 32], strides = [1, 1]} : vector<8x128xf32> to vector<8x32xf32>
    %307 = arith.negf %306 : vector<8x32xf32>
    %308 = math.exp %307 : vector<8x32xf32>
    %cst_108 = arith.constant 1.000000e+00 : f32
    %309 = vector.broadcast %cst_108 : f32 to vector<8x32xf32>
    %310 = arith.addf %309, %308 : vector<8x32xf32>
    %311 = arith.divf %309, %310 : vector<8x32xf32>
    %312 = vector.extract_strided_slice %299 {offsets = [0, 64], sizes = [8, 32], strides = [1, 1]} : vector<8x128xf32> to vector<8x32xf32>
    %313 = math.tanh %312 : vector<8x32xf32>
    %314 = vector.extract_strided_slice %299 {offsets = [0, 96], sizes = [8, 32], strides = [1, 1]} : vector<8x128xf32> to vector<8x32xf32>
    %315 = arith.negf %314 : vector<8x32xf32>
    %316 = math.exp %315 : vector<8x32xf32>
    %cst_109 = arith.constant 1.000000e+00 : f32
    %317 = vector.broadcast %cst_109 : f32 to vector<8x32xf32>
    %318 = arith.addf %317, %316 : vector<8x32xf32>
    %319 = arith.divf %317, %318 : vector<8x32xf32>
    %320 = arith.mulf %311, %258 : vector<8x32xf32>
    %321 = arith.mulf %305, %313 : vector<8x32xf32>
    %322 = arith.addf %320, %321 : vector<8x32xf32>
    %323 = math.tanh %322 : vector<8x32xf32>
    %324 = arith.mulf %319, %323 : vector<8x32xf32>
    %c4_110 = arith.constant 4 : index
    %c0_111 = arith.constant 0 : index
    %c0_112 = arith.constant 0 : index
    %325 = vector.load %arg5[%c4_110, %c0_111, %c0_112] : memref<8x8x32xf32, #tpu.memory_space<vmem>>, vector<1x8x32xf32>
    %326 = vector.shape_cast %325 : vector<1x8x32xf32> to vector<8x32xf32>
    %327 = vector.shape_cast %296 : vector<8x32xf32> to vector<1x8x32xf32>
    tpu.vector_store %arg5[%c4_110, %c0_111, %c0_112], %327 {strides = array<i32>} : memref<8x8x32xf32, #tpu.memory_space<vmem>>, vector<1x8x32xf32>,
    %c3_113 = arith.constant 3 : index
    %c0_114 = arith.constant 0 : index
    %c0_115 = arith.constant 0 : index
    %328 = vector.load %arg6[%c3_113, %c0_114, %c0_115] : memref<8x8x32xf32, #tpu.memory_space<vmem>>, vector<1x8x32xf32>
    %329 = vector.shape_cast %328 : vector<1x8x32xf32> to vector<8x32xf32>
    %330 = vector.shape_cast %324 : vector<8x32xf32> to vector<1x8x32xf32>
    tpu.vector_store %arg6[%c3_113, %c0_114, %c0_115], %330 {strides = array<i32>} : memref<8x8x32xf32, #tpu.memory_space<vmem>>, vector<1x8x32xf32>,
    %cst_116 = arith.constant dense<0.000000e+00> : vector<8x128xf32>
    %331 = tpu.matmul %296, %4, %cst_116 {dimension_numbers = #tpu.dot_dimension_numbers<[1], [0], [0], [1], [0, 0, 1, 1], [], []>} : vector<8x32xf32>, vector<32x128xf32>, vector<8x128xf32> -> vector<8x128xf32>
    %cst_117 = arith.constant dense<0.000000e+00> : vector<8x128xf32>
    %332 = tpu.matmul %324, %6, %cst_117 {dimension_numbers = #tpu.dot_dimension_numbers<[1], [0], [0], [1], [0, 0, 1, 1], [], []>} : vector<8x32xf32>, vector<32x128xf32>, vector<8x128xf32> -> vector<8x128xf32>
    %c0_118 = arith.constant 0 : index
    %c5_119 = arith.constant 5 : index
    %c0_120 = arith.constant 0 : index
    %c0_121 = arith.constant 0 : index
    %333 = vector.load %arg2[%c0_118, %c5_119, %c0_120, %c0_121] : memref<1x8x8x128xf32, #tpu.memory_space<vmem>>, vector<1x1x8x128xf32>
    %334 = vector.shape_cast %333 : vector<1x1x8x128xf32> to vector<8x128xf32>
    %335 = arith.addf %334, %331 : vector<8x128xf32>
    %336 = vector.extract_strided_slice %335 {offsets = [0, 0], sizes = [8, 32], strides = [1, 1]} : vector<8x128xf32> to vector<8x32xf32>
    %337 = arith.negf %336 : vector<8x32xf32>
    %338 = math.exp %337 : vector<8x32xf32>
    %cst_122 = arith.constant 1.000000e+00 : f32
    %339 = vector.broadcast %cst_122 : f32 to vector<8x32xf32>
    %340 = arith.addf %339, %338 : vector<8x32xf32>
    %341 = arith.divf %339, %340 : vector<8x32xf32>
    %342 = vector.extract_strided_slice %335 {offsets = [0, 32], sizes = [8, 32], strides = [1, 1]} : vector<8x128xf32> to vector<8x32xf32>
    %343 = arith.negf %342 : vector<8x32xf32>
    %344 = math.exp %343 : vector<8x32xf32>
    %cst_123 = arith.constant 1.000000e+00 : f32
    %345 = vector.broadcast %cst_123 : f32 to vector<8x32xf32>
    %346 = arith.addf %345, %344 : vector<8x32xf32>
    %347 = arith.divf %345, %346 : vector<8x32xf32>
    %348 = vector.extract_strided_slice %335 {offsets = [0, 64], sizes = [8, 32], strides = [1, 1]} : vector<8x128xf32> to vector<8x32xf32>
    %349 = math.tanh %348 : vector<8x32xf32>
    %350 = vector.extract_strided_slice %335 {offsets = [0, 96], sizes = [8, 32], strides = [1, 1]} : vector<8x128xf32> to vector<8x32xf32>
    %351 = arith.negf %350 : vector<8x32xf32>
    %352 = math.exp %351 : vector<8x32xf32>
    %cst_124 = arith.constant 1.000000e+00 : f32
    %353 = vector.broadcast %cst_124 : f32 to vector<8x32xf32>
    %354 = arith.addf %353, %352 : vector<8x32xf32>
    %355 = arith.divf %353, %354 : vector<8x32xf32>
    %356 = arith.mulf %347, %294 : vector<8x32xf32>
    %357 = arith.mulf %341, %349 : vector<8x32xf32>
    %358 = arith.addf %356, %357 : vector<8x32xf32>
    %359 = math.tanh %358 : vector<8x32xf32>
    %360 = arith.mulf %355, %359 : vector<8x32xf32>
    %c0_125 = arith.constant 0 : index
    %c2_126 = arith.constant 2 : index
    %c0_127 = arith.constant 0 : index
    %c0_128 = arith.constant 0 : index
    %361 = vector.load %arg3[%c0_125, %c2_126, %c0_127, %c0_128] : memref<1x8x8x128xf32, #tpu.memory_space<vmem>>, vector<1x1x8x128xf32>
    %362 = vector.shape_cast %361 : vector<1x1x8x128xf32> to vector<8x128xf32>
    %363 = arith.addf %362, %332 : vector<8x128xf32>
    %364 = vector.extract_strided_slice %363 {offsets = [0, 0], sizes = [8, 32], strides = [1, 1]} : vector<8x128xf32> to vector<8x32xf32>
    %365 = arith.negf %364 : vector<8x32xf32>
    %366 = math.exp %365 : vector<8x32xf32>
    %cst_129 = arith.constant 1.000000e+00 : f32
    %367 = vector.broadcast %cst_129 : f32 to vector<8x32xf32>
    %368 = arith.addf %367, %366 : vector<8x32xf32>
    %369 = arith.divf %367, %368 : vector<8x32xf32>
    %370 = vector.extract_strided_slice %363 {offsets = [0, 32], sizes = [8, 32], strides = [1, 1]} : vector<8x128xf32> to vector<8x32xf32>
    %371 = arith.negf %370 : vector<8x32xf32>
    %372 = math.exp %371 : vector<8x32xf32>
    %cst_130 = arith.constant 1.000000e+00 : f32
    %373 = vector.broadcast %cst_130 : f32 to vector<8x32xf32>
    %374 = arith.addf %373, %372 : vector<8x32xf32>
    %375 = arith.divf %373, %374 : vector<8x32xf32>
    %376 = vector.extract_strided_slice %363 {offsets = [0, 64], sizes = [8, 32], strides = [1, 1]} : vector<8x128xf32> to vector<8x32xf32>
    %377 = math.tanh %376 : vector<8x32xf32>
    %378 = vector.extract_strided_slice %363 {offsets = [0, 96], sizes = [8, 32], strides = [1, 1]} : vector<8x128xf32> to vector<8x32xf32>
    %379 = arith.negf %378 : vector<8x32xf32>
    %380 = math.exp %379 : vector<8x32xf32>
    %cst_131 = arith.constant 1.000000e+00 : f32
    %381 = vector.broadcast %cst_131 : f32 to vector<8x32xf32>
    %382 = arith.addf %381, %380 : vector<8x32xf32>
    %383 = arith.divf %381, %382 : vector<8x32xf32>
    %384 = arith.mulf %375, %322 : vector<8x32xf32>
    %385 = arith.mulf %369, %377 : vector<8x32xf32>
    %386 = arith.addf %384, %385 : vector<8x32xf32>
    %387 = math.tanh %386 : vector<8x32xf32>
    %388 = arith.mulf %383, %387 : vector<8x32xf32>
    %c5_132 = arith.constant 5 : index
    %c0_133 = arith.constant 0 : index
    %c0_134 = arith.constant 0 : index
    %389 = vector.load %arg5[%c5_132, %c0_133, %c0_134] : memref<8x8x32xf32, #tpu.memory_space<vmem>>, vector<1x8x32xf32>
    %390 = vector.shape_cast %389 : vector<1x8x32xf32> to vector<8x32xf32>
    %391 = vector.shape_cast %360 : vector<8x32xf32> to vector<1x8x32xf32>
    tpu.vector_store %arg5[%c5_132, %c0_133, %c0_134], %391 {strides = array<i32>} : memref<8x8x32xf32, #tpu.memory_space<vmem>>, vector<1x8x32xf32>,
    %c2_135 = arith.constant 2 : index
    %c0_136 = arith.constant 0 : index
    %c0_137 = arith.constant 0 : index
    %392 = vector.load %arg6[%c2_135, %c0_136, %c0_137] : memref<8x8x32xf32, #tpu.memory_space<vmem>>, vector<1x8x32xf32>
    %393 = vector.shape_cast %392 : vector<1x8x32xf32> to vector<8x32xf32>
    %394 = vector.shape_cast %388 : vector<8x32xf32> to vector<1x8x32xf32>
    tpu.vector_store %arg6[%c2_135, %c0_136, %c0_137], %394 {strides = array<i32>} : memref<8x8x32xf32, #tpu.memory_space<vmem>>, vector<1x8x32xf32>,
    %cst_138 = arith.constant dense<0.000000e+00> : vector<8x128xf32>
    %395 = tpu.matmul %360, %4, %cst_138 {dimension_numbers = #tpu.dot_dimension_numbers<[1], [0], [0], [1], [0, 0, 1, 1], [], []>} : vector<8x32xf32>, vector<32x128xf32>, vector<8x128xf32> -> vector<8x128xf32>
    %cst_139 = arith.constant dense<0.000000e+00> : vector<8x128xf32>
    %396 = tpu.matmul %388, %6, %cst_139 {dimension_numbers = #tpu.dot_dimension_numbers<[1], [0], [0], [1], [0, 0, 1, 1], [], []>} : vector<8x32xf32>, vector<32x128xf32>, vector<8x128xf32> -> vector<8x128xf32>
    %c0_140 = arith.constant 0 : index
    %c6_141 = arith.constant 6 : index
    %c0_142 = arith.constant 0 : index
    %c0_143 = arith.constant 0 : index
    %397 = vector.load %arg2[%c0_140, %c6_141, %c0_142, %c0_143] : memref<1x8x8x128xf32, #tpu.memory_space<vmem>>, vector<1x1x8x128xf32>
    %398 = vector.shape_cast %397 : vector<1x1x8x128xf32> to vector<8x128xf32>
    %399 = arith.addf %398, %395 : vector<8x128xf32>
    %400 = vector.extract_strided_slice %399 {offsets = [0, 0], sizes = [8, 32], strides = [1, 1]} : vector<8x128xf32> to vector<8x32xf32>
    %401 = arith.negf %400 : vector<8x32xf32>
    %402 = math.exp %401 : vector<8x32xf32>
    %cst_144 = arith.constant 1.000000e+00 : f32
    %403 = vector.broadcast %cst_144 : f32 to vector<8x32xf32>
    %404 = arith.addf %403, %402 : vector<8x32xf32>
    %405 = arith.divf %403, %404 : vector<8x32xf32>
    %406 = vector.extract_strided_slice %399 {offsets = [0, 32], sizes = [8, 32], strides = [1, 1]} : vector<8x128xf32> to vector<8x32xf32>
    %407 = arith.negf %406 : vector<8x32xf32>
    %408 = math.exp %407 : vector<8x32xf32>
    %cst_145 = arith.constant 1.000000e+00 : f32
    %409 = vector.broadcast %cst_145 : f32 to vector<8x32xf32>
    %410 = arith.addf %409, %408 : vector<8x32xf32>
    %411 = arith.divf %409, %410 : vector<8x32xf32>
    %412 = vector.extract_strided_slice %399 {offsets = [0, 64], sizes = [8, 32], strides = [1, 1]} : vector<8x128xf32> to vector<8x32xf32>
    %413 = math.tanh %412 : vector<8x32xf32>
    %414 = vector.extract_strided_slice %399 {offsets = [0, 96], sizes = [8, 32], strides = [1, 1]} : vector<8x128xf32> to vector<8x32xf32>
    %415 = arith.negf %414 : vector<8x32xf32>
    %416 = math.exp %415 : vector<8x32xf32>
    %cst_146 = arith.constant 1.000000e+00 : f32
    %417 = vector.broadcast %cst_146 : f32 to vector<8x32xf32>
    %418 = arith.addf %417, %416 : vector<8x32xf32>
    %419 = arith.divf %417, %418 : vector<8x32xf32>
    %420 = arith.mulf %411, %358 : vector<8x32xf32>
    %421 = arith.mulf %405, %413 : vector<8x32xf32>
    %422 = arith.addf %420, %421 : vector<8x32xf32>
    %423 = math.tanh %422 : vector<8x32xf32>
    %424 = arith.mulf %419, %423 : vector<8x32xf32>
    %c0_147 = arith.constant 0 : index
    %c1_148 = arith.constant 1 : index
    %c0_149 = arith.constant 0 : index
    %c0_150 = arith.constant 0 : index
    %425 = vector.load %arg3[%c0_147, %c1_148, %c0_149, %c0_150] : memref<1x8x8x128xf32, #tpu.memory_space<vmem>>, vector<1x1x8x128xf32>
    %426 = vector.shape_cast %425 : vector<1x1x8x128xf32> to vector<8x128xf32>
    %427 = arith.addf %426, %396 : vector<8x128xf32>
    %428 = vector.extract_strided_slice %427 {offsets = [0, 0], sizes = [8, 32], strides = [1, 1]} : vector<8x128xf32> to vector<8x32xf32>
    %429 = arith.negf %428 : vector<8x32xf32>
    %430 = math.exp %429 : vector<8x32xf32>
    %cst_151 = arith.constant 1.000000e+00 : f32
    %431 = vector.broadcast %cst_151 : f32 to vector<8x32xf32>
    %432 = arith.addf %431, %430 : vector<8x32xf32>
    %433 = arith.divf %431, %432 : vector<8x32xf32>
    %434 = vector.extract_strided_slice %427 {offsets = [0, 32], sizes = [8, 32], strides = [1, 1]} : vector<8x128xf32> to vector<8x32xf32>
    %435 = arith.negf %434 : vector<8x32xf32>
    %436 = math.exp %435 : vector<8x32xf32>
    %cst_152 = arith.constant 1.000000e+00 : f32
    %437 = vector.broadcast %cst_152 : f32 to vector<8x32xf32>
    %438 = arith.addf %437, %436 : vector<8x32xf32>
    %439 = arith.divf %437, %438 : vector<8x32xf32>
    %440 = vector.extract_strided_slice %427 {offsets = [0, 64], sizes = [8, 32], strides = [1, 1]} : vector<8x128xf32> to vector<8x32xf32>
    %441 = math.tanh %440 : vector<8x32xf32>
    %442 = vector.extract_strided_slice %427 {offsets = [0, 96], sizes = [8, 32], strides = [1, 1]} : vector<8x128xf32> to vector<8x32xf32>
    %443 = arith.negf %442 : vector<8x32xf32>
    %444 = math.exp %443 : vector<8x32xf32>
    %cst_153 = arith.constant 1.000000e+00 : f32
    %445 = vector.broadcast %cst_153 : f32 to vector<8x32xf32>
    %446 = arith.addf %445, %444 : vector<8x32xf32>
    %447 = arith.divf %445, %446 : vector<8x32xf32>
    %448 = arith.mulf %439, %386 : vector<8x32xf32>
    %449 = arith.mulf %433, %441 : vector<8x32xf32>
    %450 = arith.addf %448, %449 : vector<8x32xf32>
    %451 = math.tanh %450 : vector<8x32xf32>
    %452 = arith.mulf %447, %451 : vector<8x32xf32>
    %c6_154 = arith.constant 6 : index
    %c0_155 = arith.constant 0 : index
    %c0_156 = arith.constant 0 : index
    %453 = vector.load %arg5[%c6_154, %c0_155, %c0_156] : memref<8x8x32xf32, #tpu.memory_space<vmem>>, vector<1x8x32xf32>
    %454 = vector.shape_cast %453 : vector<1x8x32xf32> to vector<8x32xf32>
    %455 = vector.shape_cast %424 : vector<8x32xf32> to vector<1x8x32xf32>
    tpu.vector_store %arg5[%c6_154, %c0_155, %c0_156], %455 {strides = array<i32>} : memref<8x8x32xf32, #tpu.memory_space<vmem>>, vector<1x8x32xf32>,
    %c1_157 = arith.constant 1 : index
    %c0_158 = arith.constant 0 : index
    %c0_159 = arith.constant 0 : index
    %456 = vector.load %arg6[%c1_157, %c0_158, %c0_159] : memref<8x8x32xf32, #tpu.memory_space<vmem>>, vector<1x8x32xf32>
    %457 = vector.shape_cast %456 : vector<1x8x32xf32> to vector<8x32xf32>
    %458 = vector.shape_cast %452 : vector<8x32xf32> to vector<1x8x32xf32>
    tpu.vector_store %arg6[%c1_157, %c0_158, %c0_159], %458 {strides = array<i32>} : memref<8x8x32xf32, #tpu.memory_space<vmem>>, vector<1x8x32xf32>,
    %cst_160 = arith.constant dense<0.000000e+00> : vector<8x128xf32>
    %459 = tpu.matmul %424, %4, %cst_160 {dimension_numbers = #tpu.dot_dimension_numbers<[1], [0], [0], [1], [0, 0, 1, 1], [], []>} : vector<8x32xf32>, vector<32x128xf32>, vector<8x128xf32> -> vector<8x128xf32>
    %cst_161 = arith.constant dense<0.000000e+00> : vector<8x128xf32>
    %460 = tpu.matmul %452, %6, %cst_161 {dimension_numbers = #tpu.dot_dimension_numbers<[1], [0], [0], [1], [0, 0, 1, 1], [], []>} : vector<8x32xf32>, vector<32x128xf32>, vector<8x128xf32> -> vector<8x128xf32>
    %c0_162 = arith.constant 0 : index
    %c7_163 = arith.constant 7 : index
    %c0_164 = arith.constant 0 : index
    %c0_165 = arith.constant 0 : index
    %461 = vector.load %arg2[%c0_162, %c7_163, %c0_164, %c0_165] : memref<1x8x8x128xf32, #tpu.memory_space<vmem>>, vector<1x1x8x128xf32>
    %462 = vector.shape_cast %461 : vector<1x1x8x128xf32> to vector<8x128xf32>
    %463 = arith.addf %462, %459 : vector<8x128xf32>
    %464 = vector.extract_strided_slice %463 {offsets = [0, 0], sizes = [8, 32], strides = [1, 1]} : vector<8x128xf32> to vector<8x32xf32>
    %465 = arith.negf %464 : vector<8x32xf32>
    %466 = math.exp %465 : vector<8x32xf32>
    %cst_166 = arith.constant 1.000000e+00 : f32
    %467 = vector.broadcast %cst_166 : f32 to vector<8x32xf32>
    %468 = arith.addf %467, %466 : vector<8x32xf32>
    %469 = arith.divf %467, %468 : vector<8x32xf32>
    %470 = vector.extract_strided_slice %463 {offsets = [0, 32], sizes = [8, 32], strides = [1, 1]} : vector<8x128xf32> to vector<8x32xf32>
    %471 = arith.negf %470 : vector<8x32xf32>
    %472 = math.exp %471 : vector<8x32xf32>
    %cst_167 = arith.constant 1.000000e+00 : f32
    %473 = vector.broadcast %cst_167 : f32 to vector<8x32xf32>
    %474 = arith.addf %473, %472 : vector<8x32xf32>
    %475 = arith.divf %473, %474 : vector<8x32xf32>
    %476 = vector.extract_strided_slice %463 {offsets = [0, 64], sizes = [8, 32], strides = [1, 1]} : vector<8x128xf32> to vector<8x32xf32>
    %477 = math.tanh %476 : vector<8x32xf32>
    %478 = vector.extract_strided_slice %463 {offsets = [0, 96], sizes = [8, 32], strides = [1, 1]} : vector<8x128xf32> to vector<8x32xf32>
    %479 = arith.negf %478 : vector<8x32xf32>
    %480 = math.exp %479 : vector<8x32xf32>
    %cst_168 = arith.constant 1.000000e+00 : f32
    %481 = vector.broadcast %cst_168 : f32 to vector<8x32xf32>
    %482 = arith.addf %481, %480 : vector<8x32xf32>
    %483 = arith.divf %481, %482 : vector<8x32xf32>
    %484 = arith.mulf %475, %422 : vector<8x32xf32>
    %485 = arith.mulf %469, %477 : vector<8x32xf32>
    %486 = arith.addf %484, %485 : vector<8x32xf32>
    %487 = math.tanh %486 : vector<8x32xf32>
    %488 = arith.mulf %483, %487 : vector<8x32xf32>
    %c0_169 = arith.constant 0 : index
    %c0_170 = arith.constant 0 : index
    %c0_171 = arith.constant 0 : index
    %c0_172 = arith.constant 0 : index
    %489 = vector.load %arg3[%c0_169, %c0_170, %c0_171, %c0_172] : memref<1x8x8x128xf32, #tpu.memory_space<vmem>>, vector<1x1x8x128xf32>
    %490 = vector.shape_cast %489 : vector<1x1x8x128xf32> to vector<8x128xf32>
    %491 = arith.addf %490, %460 : vector<8x128xf32>
    %492 = vector.extract_strided_slice %491 {offsets = [0, 0], sizes = [8, 32], strides = [1, 1]} : vector<8x128xf32> to vector<8x32xf32>
    %493 = arith.negf %492 : vector<8x32xf32>
    %494 = math.exp %493 : vector<8x32xf32>
    %cst_173 = arith.constant 1.000000e+00 : f32
    %495 = vector.broadcast %cst_173 : f32 to vector<8x32xf32>
    %496 = arith.addf %495, %494 : vector<8x32xf32>
    %497 = arith.divf %495, %496 : vector<8x32xf32>
    %498 = vector.extract_strided_slice %491 {offsets = [0, 32], sizes = [8, 32], strides = [1, 1]} : vector<8x128xf32> to vector<8x32xf32>
    %499 = arith.negf %498 : vector<8x32xf32>
    %500 = math.exp %499 : vector<8x32xf32>
    %cst_174 = arith.constant 1.000000e+00 : f32
    %501 = vector.broadcast %cst_174 : f32 to vector<8x32xf32>
    %502 = arith.addf %501, %500 : vector<8x32xf32>
    %503 = arith.divf %501, %502 : vector<8x32xf32>
    %504 = vector.extract_strided_slice %491 {offsets = [0, 64], sizes = [8, 32], strides = [1, 1]} : vector<8x128xf32> to vector<8x32xf32>
    %505 = math.tanh %504 : vector<8x32xf32>
    %506 = vector.extract_strided_slice %491 {offsets = [0, 96], sizes = [8, 32], strides = [1, 1]} : vector<8x128xf32> to vector<8x32xf32>
    %507 = arith.negf %506 : vector<8x32xf32>
    %508 = math.exp %507 : vector<8x32xf32>
    %cst_175 = arith.constant 1.000000e+00 : f32
    %509 = vector.broadcast %cst_175 : f32 to vector<8x32xf32>
    %510 = arith.addf %509, %508 : vector<8x32xf32>
    %511 = arith.divf %509, %510 : vector<8x32xf32>
    %512 = arith.mulf %503, %450 : vector<8x32xf32>
    %513 = arith.mulf %497, %505 : vector<8x32xf32>
    %514 = arith.addf %512, %513 : vector<8x32xf32>
    %515 = math.tanh %514 : vector<8x32xf32>
    %516 = arith.mulf %511, %515 : vector<8x32xf32>
    %c7_176 = arith.constant 7 : index
    %c0_177 = arith.constant 0 : index
    %c0_178 = arith.constant 0 : index
    %517 = vector.load %arg5[%c7_176, %c0_177, %c0_178] : memref<8x8x32xf32, #tpu.memory_space<vmem>>, vector<1x8x32xf32>
    %518 = vector.shape_cast %517 : vector<1x8x32xf32> to vector<8x32xf32>
    %519 = vector.shape_cast %488 : vector<8x32xf32> to vector<1x8x32xf32>
    tpu.vector_store %arg5[%c7_176, %c0_177, %c0_178], %519 {strides = array<i32>} : memref<8x8x32xf32, #tpu.memory_space<vmem>>, vector<1x8x32xf32>,
    %c0_179 = arith.constant 0 : index
    %c0_180 = arith.constant 0 : index
    %c0_181 = arith.constant 0 : index
    %520 = vector.load %arg6[%c0_179, %c0_180, %c0_181] : memref<8x8x32xf32, #tpu.memory_space<vmem>>, vector<1x8x32xf32>
    %521 = vector.shape_cast %520 : vector<1x8x32xf32> to vector<8x32xf32>
    %522 = vector.shape_cast %516 : vector<8x32xf32> to vector<1x8x32xf32>
    tpu.vector_store %arg6[%c0_179, %c0_180, %c0_181], %522 {strides = array<i32>} : memref<8x8x32xf32, #tpu.memory_space<vmem>>, vector<1x8x32xf32>,
    %c0_182 = arith.constant 0 : index
    %c0_183 = arith.constant 0 : index
    %523 = vector.load %arg7[%c0_182, %c0_183] : memref<8x32xf32, #tpu.memory_space<vmem>>, vector<8x32xf32>
    tpu.vector_store %arg7[%c0_182, %c0_183], %488 {strides = array<i32>} : memref<8x32xf32, #tpu.memory_space<vmem>>, vector<8x32xf32>,
    %c0_184 = arith.constant 0 : index
    %c0_185 = arith.constant 0 : index
    %524 = vector.load %arg8[%c0_184, %c0_185] : memref<8x32xf32, #tpu.memory_space<vmem>>, vector<8x32xf32>
    tpu.vector_store %arg8[%c0_184, %c0_185], %486 {strides = array<i32>} : memref<8x32xf32, #tpu.memory_space<vmem>>, vector<8x32xf32>,
    %c0_186 = arith.constant 0 : index
    %c0_187 = arith.constant 0 : index
    %525 = vector.load %arg9[%c0_186, %c0_187] : memref<8x32xf32, #tpu.memory_space<vmem>>, vector<8x32xf32>
    tpu.vector_store %arg9[%c0_186, %c0_187], %516 {strides = array<i32>} : memref<8x32xf32, #tpu.memory_space<vmem>>, vector<8x32xf32>,
    %c0_188 = arith.constant 0 : index
    %c0_189 = arith.constant 0 : index
    %526 = vector.load %arg10[%c0_188, %c0_189] : memref<8x32xf32, #tpu.memory_space<vmem>>, vector<8x32xf32>
    tpu.vector_store %arg10[%c0_188, %c0_189], %514 {strides = array<i32>} : memref<8x32xf32, #tpu.memory_space<vmem>>, vector<8x32xf32>,
    return
  }
  func.func @transform_0(%arg0: i32, %arg1: i32) -> (i32, i32, i32, i32) {
    %c0_i32 = arith.constant 0 : i32
    %c0_i32_0 = arith.constant 0 : i32
    %c0_i32_1 = arith.constant 0 : i32
    return %c0_i32, %arg1, %arg0, %c0_i32_0 : i32, i32, i32, i32
  }
  func.func @transform_1(%arg0: i32, %arg1: i32) -> (i32, i32, i32, i32) {
    %c0_i32 = arith.constant 0 : i32
    %0 = arith.subi %c0_i32, %arg1 : i32
    %c1_i32 = arith.constant 1 : i32
    %c0_i32_0 = arith.constant 0 : i32
    %c0_i32_1 = arith.constant 0 : i32
    return %c1_i32, %0, %arg0, %c0_i32_0 : i32, i32, i32, i32
  }
  func.func @transform_2(%arg0: i32, %arg1: i32) -> (i32, i32, i32) {
    %c0_i32 = arith.constant 0 : i32
    %c0_i32_0 = arith.constant 0 : i32
    %c0_i32_1 = arith.constant 0 : i32
    %c0_i32_2 = arith.constant 0 : i32
    return %c0_i32, %c0_i32_0, %c0_i32_1 : i32, i32, i32
  }
  func.func @transform_3(%arg0: i32, %arg1: i32) -> (i32, i32, i32) {
    %c0_i32 = arith.constant 0 : i32
    %c0_i32_0 = arith.constant 0 : i32
    return %arg1, %arg0, %c0_i32 : i32, i32, i32
  }
  func.func @transform_4(%arg0: i32, %arg1: i32) -> (i32, i32, i32) {
    %c0_i32 = arith.constant 0 : i32
    %0 = arith.subi %c0_i32, %arg1 : i32
    %c0_i32_0 = arith.constant 0 : i32
    %c0_i32_1 = arith.constant 0 : i32
    return %0, %arg0, %c0_i32_0 : i32, i32, i32
  }
}

</mosaic_0001>

<llo_original>
// kernel: _lambda_.2
$region0: #{_lambda_.2}
  #allocation0 [shape = 'u32[]', space=smem, size = 0x4, offset = 0x4, fixed_abs, tag = 'smem constant byte address 0x4 - core index']
  #allocation1 [shape = 'u32[72,128]{1,0:T(1,128)}', space=vmem, size = 0x9000, scoped, tag = 'internal scratch']
  #allocation2 [shape = 'f32[8,32]{1,0:T(8,128)}', space=vmem, size = 0x1000, scoped, tag = 'scratch operand']
  #allocation3 [shape = 'f32[8,32]{1,0:T(8,128)}', space=vmem, size = 0x1000, scoped, tag = 'scratch operand']
  #allocation4 [shape = 'f32[8,32]{1,0:T(8,128)}', space=vmem, size = 0x1000, scoped, tag = 'scratch operand']
  #allocation5 [shape = 'f32[8,32]{1,0:T(8,128)}', space=vmem, size = 0x1000, scoped, tag = 'scratch operand']
  %s0 = inlined_call_operand.vmem [shape: f32[2,8,8,128], index: 0, kind: input, shape index: {}, may-alias: {0,1}]
  %s1 = inlined_call_operand.vmem [shape: f32[2,8,8,128], index: 1, kind: input, shape index: {}, may-alias: {0,1}]
  %s2 = inlined_call_operand.vmem [shape: f32[2,32,128], index: 2, kind: input, shape index: {}]
  %s3 = inlined_call_operand.vmem [shape: f32[8,8,32], index: 3, kind: output, shape index: {0}]
  %s4 = inlined_call_operand.vmem [shape: f32[8,8,32], index: 4, kind: output, shape index: {1}]
  %5 = xla_tuple %s3, %s4
  %s6 = sld [smem:[#allocation0]]
  $region34: #{_lambda_.2} parent=0
    _
  %s8 = ssub.s32 1, %s6
  %s9 = scalar_select 0, %s8, %s6
  // Predicated region
  $region2: #{_lambda_.2} parent=0 // pred_check
    _
  $region3: #{_lambda_.2} parent=0 // pred_check_branch
    %11 = sbr.rel (0) target = $region5
  $region4: #{_lambda_.2} parent=0 // pred_region
    _
  $region5: #{_lambda_.2} parent=0 // pred_fallthru
    _
  // Predicated region
  $region6: #{_lambda_.2} parent=0 // pred_check
    _
  $region7: #{_lambda_.2} parent=0 // pred_check_branch
    %13 = sbr.rel (0) target = $region9
  $region8: #{_lambda_.2} parent=0 // pred_region
    %s14 = ssub.s32 0, 0
    %s15 = smul.u32 8, %s14
    %p16 = scmp.lt.s32.totalorder %s15, 7
    %s17 = scalar_select %p16, %s15, 7
    %s18 = sadd.s32 %s17, 8
    %s19 = smul.addr %s18, 8
    %s20 = scalar_lea.vmem %s1, %s19
    %s21 = ssub.s32 0, 0
    %s22 = smul.u32 8, %s21
  $region9: #{_lambda_.2} parent=0 // pred_fallthru
    _
  // Predicated region
  $region10: #{_lambda_.2} parent=0 // pred_check
    _
  $region11: #{_lambda_.2} parent=0 // pred_check_branch
    %24 = sbr.rel (0) target = $region13
  $region12: #{_lambda_.2} parent=0 // pred_region
    _
  $region13: #{_lambda_.2} parent=0 // pred_fallthru
    _
  %s25 = ssub.s32 0, 0
  %s26 = smul.u32 8, %s25
  %p27 = scmp.lt.s32.totalorder %s26, 7
  %s28 = scalar_select %p27, %s26, 7
  %s29 = sadd.s32 %s28, 8
  %s30 = smul.addr %s29, 8
  %s31 = scalar_lea.vmem %s1, %s30
  %s32 = ssub.s32 0, 0
  %s33 = smul.u32 8, %s32
  %p34 = scmp.lt.s32.totalorder %s33, 7
  %s35 = scalar_select %p34, %s33, 7
  %s36 = smul.addr %s35, 8
  %s37 = scalar_lea.vmem %s4, %s36
  %s38 = ssub.s32 0, 0
  %s39 = smul.u32 8, %s38
  %p40 = scmp.lt.s32.totalorder %s39, 7
  %s41 = scalar_select %p40, %s39, 7
  %s42 = sadd.s32 %s41, 8
  %s43 = smul.addr %s42, 8
  %s44 = scalar_lea.vmem %s1, %s43
  %s45 = ssub.s32 0, 0
  %s46 = smul.u32 8, %s45
  %s47 = ssub.s32 0, 0
  %s48 = smul.u32 8, %s47
  %p49 = scmp.lt.s32.totalorder %s48, 7
  %s50 = scalar_select %p49, %s48, 7
  %s51 = smul.addr %s50, 8
  %s52 = scalar_lea.vmem %s4, %s51
  %s53 = ssub.s32 0, 0
  %s54 = smul.u32 8, %s53
  %p55 = scmp.eq.s32.totalorder 0, 0
  // Predicated region
  $region14: #{_lambda_.2} parent=0 // pred_check
    %p56 = pneg %p55
  $region15: #{_lambda_.2} parent=0 // pred_check_branch
    %58 = sbr.rel (%p56) target = $region17
  $region16: #{_lambda_.2} parent=0 // pred_region
    %vm59 = vcmask 261120
    %60 = vst.msk [vmem:[#allocation2] sm:$0xff] %vm59, 0.0
    %61 = vst.msk [vmem:[#allocation3] sm:$0xff] %vm59, 0.0
    %62 = vst.msk [vmem:[#allocation4] sm:$0xff] %vm59, 0.0
    %63 = vst.msk [vmem:[#allocation5] sm:$0xff] %vm59, 0.0
  $region17: #{_lambda_.2} parent=0 // pred_fallthru
    _
  %v64 = vld [vmem:[%s2] sm:$0xff]
  %v65 = vld [vmem:[%s2 + $0x8] sm:$0xff]
  %v66 = vld [vmem:[%s2 + $0x10] sm:$0xff]
  %v67 = vld [vmem:[%s2 + $0x18] sm:$0xff]
  %s68 = scalar_lea.vmem %s2, 32
  %v69 = vld [vmem:[%s68] sm:$0xff]
  %v70 = vld [vmem:[%s68 + $0x8] sm:$0xff]
  %v71 = vld [vmem:[%s68 + $0x10] sm:$0xff]
  %v72 = vld [vmem:[%s68 + $0x18] sm:$0xff]
  %v73 = vld [vmem:[#allocation2] sm:$0xff]
  %v74 = vld [vmem:[#allocation3] sm:$0xff]
  %v75 = vld [vmem:[#allocation4] sm:$0xff]
  %v76 = vld [vmem:[#allocation5] sm:$0xff]
  %vm77 = vcmask 261120
  %v79 = vsel %vm77, %v73, 0
  %81 = vmatpush.msra.mxu0 0.0
  %82 = vmatpush.msra.mxu0 0.0
  %83 = vmatpush.msra.mxu0 0.0
  %84 = vmatpush.msra.mxu0 0.0
  %85 = vmatpush.msra.mxu0 0.0
  %86 = vmatpush.msra.mxu0 0.0
  %87 = vmatpush.msra.mxu0 0.0
  %88 = vmatpush.msra.mxu0 0.0
  %89 = vmatpush.msra.mxu0 0.0
  %90 = vmatpush.msra.mxu0 0.0
  %91 = vmatpush.msra.mxu0 0.0
  %92 = vmatpush.msra.mxu0 0.0
  %93 = vmatpush.msra.mxu0 %v67
  %94 = vmatpush.msra.mxu0 %v66
  %95 = vmatpush.msra.mxu0 %v65
  %96 = vmatpush.msra.mxu0 %v64
  %97 = vmatmul.f32.gmra.mxu0 %v79
  %v98 = vpop.f32.mrf.mxu0
  %v99 = vadd.f32 0.0, %v98
  %100 = vdwg.mxu0
  %v102 = vsel %vm77, %v75, 0
  %104 = vmatpush.msra.mxu0 0.0
  %105 = vmatpush.msra.mxu0 0.0
  %106 = vmatpush.msra.mxu0 0.0
  %107 = vmatpush.msra.mxu0 0.0
  %108 = vmatpush.msra.mxu0 0.0
  %109 = vmatpush.msra.mxu0 0.0
  %110 = vmatpush.msra.mxu0 0.0
  %111 = vmatpush.msra.mxu0 0.0
  %112 = vmatpush.msra.mxu0 0.0
  %113 = vmatpush.msra.mxu0 0.0
  %114 = vmatpush.msra.mxu0 0.0
  %115 = vmatpush.msra.mxu0 0.0
  %116 = vmatpush.msra.mxu0 %v72
  %117 = vmatpush.msra.mxu0 %v71
  %118 = vmatpush.msra.mxu0 %v70
  %119 = vmatpush.msra.mxu0 %v69
  %120 = vmatmul.f32.gmra.mxu0 %v102
  %v121 = vpop.f32.mrf.mxu0
  %v122 = vadd.f32 0.0, %v121
  %123 = vdwg.mxu0
  %v124 = vld [vmem:[%s0] sm:$0xff]
  %v125 = vadd.f32 %v124, %v99
  %v126 = vxor.u32 %v125, 2147483648
  %v127 = vmul.f32 %v126, 1.442695
  %v128 = vpow.pop %v127
  %v129 = vadd.f32 %v128, 1.0
  %v130 = vrcp.pop %v129
  %v131 = vmul.f32 %v129, %v130
  %v132 = vsub.f32 1.0, %v131
  %v133 = vmul.f32 %v130, %v132
  %v134 = vadd.f32 %v130, %v133
  %vm135 = vweird.f32 %v129
  %vm136 = vweird.f32 %v130
  %vm137 = vmor %vm135, %vm136
  %v138 = vsel %vm137, %v130, %v134
  %v139 = vand.u32 2147483647, %v129
  %vm140 = vcmp.eq.f32.partialorder %v139, 8.507059e+37
  %v141 = vand.u32 %v129, 2147483648
  %v142 = vor.u32 1.1754944e-38, %v141
  %v143 = vsel %vm140, %v142, %v138
  %v144 = vmul.f32 1.0, %v143
  %v145 = vtanh.pop %v125
  %147 = vrot.lane.b32.xlu0 %v74, 32
  %v148 = vpop.permute.xlu0 %147
  %v150 = vmul.f32 %v144, %v148
  %152 = vrot.lane.b32.xlu0 %v145, 64
  %v153 = vpop.permute.xlu0 %152
  %v155 = vmul.f32 %v144, %v153
  %157 = vrot.lane.b32.xlu0 %v155, 32
  %v158 = vpop.permute.xlu0 %157
  %v160 = vadd.f32 %v150, %v158
  %v161 = vtanh.pop %v160
  %163 = vrot.lane.b32.xlu0 %v161, 64
  %v164 = vpop.permute.xlu0 %163
  %v166 = vmul.f32 %v144, %v164
  %s167 = scalar_lea.vmem %s44, 56
  %v168 = vld [vmem:[%s167] sm:$0xff]
  %v169 = vadd.f32 %v168, %v122
  %v170 = vxor.u32 %v169, 2147483648
  %v171 = vmul.f32 %v170, 1.442695
  %v172 = vpow.pop %v171
  %v173 = vadd.f32 %v172, 1.0
  %v174 = vrcp.pop %v173
  %v175 = vmul.f32 %v173, %v174
  %v176 = vsub.f32 1.0, %v175
  %v177 = vmul.f32 %v174, %v176
  %v178 = vadd.f32 %v174, %v177
  %vm179 = vweird.f32 %v173
  %vm180 = vweird.f32 %v174
  %vm181 = vmor %vm179, %vm180
  %v182 = vsel %vm181, %v174, %v178
  %v183 = vand.u32 2147483647, %v173
  %vm184 = vcmp.eq.f32.partialorder %v183, 8.507059e+37
  %v185 = vand.u32 %v173, 2147483648
  %v186 = vor.u32 1.1754944e-38, %v185
  %v187 = vsel %vm184, %v186, %v182
  %v188 = vmul.f32 1.0, %v187
  %v189 = vtanh.pop %v169
  %191 = vrot.lane.b32.xlu0 %v76, 32
  %v192 = vpop.permute.xlu0 %191
  %v194 = vmul.f32 %v188, %v192
  %196 = vrot.lane.b32.xlu0 %v189, 64
  %v197 = vpop.permute.xlu0 %196
  %v199 = vmul.f32 %v188, %v197
  %201 = vrot.lane.b32.xlu0 %v199, 32
  %v202 = vpop.permute.xlu0 %201
  %v204 = vadd.f32 %v194, %v202
  %v205 = vtanh.pop %v204
  %207 = vrot.lane.b32.xlu0 %v205, 64
  %v208 = vpop.permute.xlu0 %207
  %v210 = vmul.f32 %v188, %v208
  %212 = vrot.lane.b32.xlu0 %v166, 32
  %v213 = vpop.permute.xlu0 %212
  %215 = vst.msk [vmem:[%s3] sm:$0xff] %vm77, %v213
  %217 = vrot.lane.b32.xlu0 %v210, 32
  %v218 = vpop.permute.xlu0 %217
  %s220 = scalar_lea.vmem %s52, 56
  %221 = vst.msk [vmem:[%s220] sm:$0xff] %vm77, %v218
  %v222 = vsel %vm77, %v213, 0
  %224 = vmatpush.msra.mxu0 0.0
  %225 = vmatpush.msra.mxu0 0.0
  %226 = vmatpush.msra.mxu0 0.0
  %227 = vmatpush.msra.mxu0 0.0
  %228 = vmatpush.msra.mxu0 0.0
  %229 = vmatpush.msra.mxu0 0.0
  %230 = vmatpush.msra.mxu0 0.0
  %231 = vmatpush.msra.mxu0 0.0
  %232 = vmatpush.msra.mxu0 0.0
  %233 = vmatpush.msra.mxu0 0.0
  %234 = vmatpush.msra.mxu0 0.0
  %235 = vmatpush.msra.mxu0 0.0
  %236 = vmatpush.msra.mxu0 %v67
  %237 = vmatpush.msra.mxu0 %v66
  %238 = vmatpush.msra.mxu0 %v65
  %239 = vmatpush.msra.mxu0 %v64
  %240 = vmatmul.f32.gmra.mxu0 %v222
  %v241 = vpop.f32.mrf.mxu0
  %v242 = vadd.f32 0.0, %v241
  %243 = vdwg.mxu0
  %v244 = vsel %vm77, %v218, 0
  %246 = vmatpush.msra.mxu0 0.0
  %247 = vmatpush.msra.mxu0 0.0
  %248 = vmatpush.msra.mxu0 0.0
  %249 = vmatpush.msra.mxu0 0.0
  %250 = vmatpush.msra.mxu0 0.0
  %251 = vmatpush.msra.mxu0 0.0
  %252 = vmatpush.msra.mxu0 0.0
  %253 = vmatpush.msra.mxu0 0.0
  %254 = vmatpush.msra.mxu0 0.0
  %255 = vmatpush.msra.mxu0 0.0
  %256 = vmatpush.msra.mxu0 0.0
  %257 = vmatpush.msra.mxu0 0.0
  %258 = vmatpush.msra.mxu0 %v72
  %259 = vmatpush.msra.mxu0 %v71
  %260 = vmatpush.msra.mxu0 %v70
  %261 = vmatpush.msra.mxu0 %v69
  %262 = vmatmul.f32.gmra.mxu0 %v244
  %v263 = vpop.f32.mrf.mxu0
  %v264 = vadd.f32 0.0, %v263
  %265 = vdwg.mxu0
  %s266 = scalar_lea.vmem %s0, 8
  %v267 = vld [vmem:[%s266] sm:$0xff]
  %v268 = vadd.f32 %v267, %v242
  %v269 = vxor.u32 %v268, 2147483648
  %v270 = vmul.f32 %v269, 1.442695
  %v271 = vpow.pop %v270
  %v272 = vadd.f32 %v271, 1.0
  %v273 = vrcp.pop %v272
  %v274 = vmul.f32 %v272, %v273
  %v275 = vsub.f32 1.0, %v274
  %v276 = vmul.f32 %v273, %v275
  %v277 = vadd.f32 %v273, %v276
  %vm278 = vweird.f32 %v272
  %vm279 = vweird.f32 %v273
  %vm280 = vmor %vm278, %vm279
  %v281 = vsel %vm280, %v273, %v277
  %v282 = vand.u32 2147483647, %v272
  %vm283 = vcmp.eq.f32.partialorder %v282, 8.507059e+37
  %v284 = vand.u32 %v272, 2147483648
  %v285 = vor.u32 1.1754944e-38, %v284
  %v286 = vsel %vm283, %v285, %v281
  %v287 = vmul.f32 1.0, %v286
  %v288 = vtanh.pop %v268
  %v289 = vmul.f32 %v287, %v160
  %291 = vrot.lane.b32.xlu0 %v288, 64
  %v292 = vpop.permute.xlu0 %291
  %v294 = vmul.f32 %v287, %v292
  %296 = vrot.lane.b32.xlu0 %v294, 32
  %v297 = vpop.permute.xlu0 %296
  %v299 = vadd.f32 %v289, %v297
  %v300 = vtanh.pop %v299
  %302 = vrot.lane.b32.xlu0 %v300, 64
  %v303 = vpop.permute.xlu0 %302
  %v305 = vmul.f32 %v287, %v303
  %s306 = scalar_lea.vmem %s44, 48
  %v307 = vld [vmem:[%s306] sm:$0xff]
  %v308 = vadd.f32 %v307, %v264
  %v309 = vxor.u32 %v308, 2147483648
  %v310 = vmul.f32 %v309, 1.442695
  %v311 = vpow.pop %v310
  %v312 = vadd.f32 %v311, 1.0
  %v313 = vrcp.pop %v312
  %v314 = vmul.f32 %v312, %v313
  %v315 = vsub.f32 1.0, %v314
  %v316 = vmul.f32 %v313, %v315
  %v317 = vadd.f32 %v313, %v316
  %vm318 = vweird.f32 %v312
  %vm319 = vweird.f32 %v313
  %vm320 = vmor %vm318, %vm319
  %v321 = vsel %vm320, %v313, %v317
  %v322 = vand.u32 2147483647, %v312
  %vm323 = vcmp.eq.f32.partialorder %v322, 8.507059e+37
  %v324 = vand.u32 %v312, 2147483648
  %v325 = vor.u32 1.1754944e-38, %v324
  %v326 = vsel %vm323, %v325, %v321
  %v327 = vmul.f32 1.0, %v326
  %v328 = vtanh.pop %v308
  %v329 = vmul.f32 %v327, %v204
  %331 = vrot.lane.b32.xlu0 %v328, 64
  %v332 = vpop.permute.xlu0 %331
  %v334 = vmul.f32 %v327, %v332
  %336 = vrot.lane.b32.xlu0 %v334, 32
  %v337 = vpop.permute.xlu0 %336
  %v339 = vadd.f32 %v329, %v337
  %v340 = vtanh.pop %v339
  %342 = vrot.lane.b32.xlu0 %v340, 64
  %v343 = vpop.permute.xlu0 %342
  %v345 = vmul.f32 %v327, %v343
  %347 = vrot.lane.b32.xlu0 %v305, 32
  %v348 = vpop.permute.xlu0 %347
  %s350 = scalar_lea.vmem %s3, 8
  %351 = vst.msk [vmem:[%s350] sm:$0xff] %vm77, %v348
  %353 = vrot.lane.b32.xlu0 %v345, 32
  %v354 = vpop.permute.xlu0 %353
  %s356 = scalar_lea.vmem %s52, 48
  %357 = vst.msk [vmem:[%s356] sm:$0xff] %vm77, %v354
  %v358 = vsel %vm77, %v348, 0
  %360 = vmatpush.msra.mxu0 0.0
  %361 = vmatpush.msra.mxu0 0.0
  %362 = vmatpush.msra.mxu0 0.0
  %363 = vmatpush.msra.mxu0 0.0
  %364 = vmatpush.msra.mxu0 0.0
  %365 = vmatpush.msra.mxu0 0.0
  %366 = vmatpush.msra.mxu0 0.0
  %367 = vmatpush.msra.mxu0 0.0
  %368 = vmatpush.msra.mxu0 0.0
  %369 = vmatpush.msra.mxu0 0.0
  %370 = vmatpush.msra.mxu0 0.0
  %371 = vmatpush.msra.mxu0 0.0
  %372 = vmatpush.msra.mxu0 %v67
  %373 = vmatpush.msra.mxu0 %v66
  %374 = vmatpush.msra.mxu0 %v65
  %375 = vmatpush.msra.mxu0 %v64
  %376 = vmatmul.f32.gmra.mxu0 %v358
  %v377 = vpop.f32.mrf.mxu0
  %v378 = vadd.f32 0.0, %v377
  %379 = vdwg.mxu0
  %v380 = vsel %vm77, %v354, 0
  %382 = vmatpush.msra.mxu0 0.0
  %383 = vmatpush.msra.mxu0 0.0
  %384 = vmatpush.msra.mxu0 0.0
  %385 = vmatpush.msra.mxu0 0.0
  %386 = vmatpush.msra.mxu0 0.0
  %387 = vmatpush.msra.mxu0 0.0
  %388 = vmatpush.msra.mxu0 0.0
  %389 = vmatpush.msra.mxu0 0.0
  %390 = vmatpush.msra.mxu0 0.0
  %391 = vmatpush.msra.mxu0 0.0
  %392 = vmatpush.msra.mxu0 0.0
  %393 = vmatpush.msra.mxu0 0.0
  %394 = vmatpush.msra.mxu0 %v72
  %395 = vmatpush.msra.mxu0 %v71
  %396 = vmatpush.msra.mxu0 %v70
  %397 = vmatpush.msra.mxu0 %v69
  %398 = vmatmul.f32.gmra.mxu0 %v380
  %v399 = vpop.f32.mrf.mxu0
  %v400 = vadd.f32 0.0, %v399
  %401 = vdwg.mxu0
  %s402 = scalar_lea.vmem %s0, 16
  %v403 = vld [vmem:[%s402] sm:$0xff]
  %v404 = vadd.f32 %v403, %v378
  %v405 = vxor.u32 %v404, 2147483648
  %v406 = vmul.f32 %v405, 1.442695
  %v407 = vpow.pop %v406
  %v408 = vadd.f32 %v407, 1.0
  %v409 = vrcp.pop %v408
  %v410 = vmul.f32 %v408, %v409
  %v411 = vsub.f32 1.0, %v410
  %v412 = vmul.f32 %v409, %v411
  %v413 = vadd.f32 %v409, %v412
  %vm414 = vweird.f32 %v408
  %vm415 = vweird.f32 %v409
  %vm416 = vmor %vm414, %vm415
  %v417 = vsel %vm416, %v409, %v413
  %v418 = vand.u32 2147483647, %v408
  %vm419 = vcmp.eq.f32.partialorder %v418, 8.507059e+37
  %v420 = vand.u32 %v408, 2147483648
  %v421 = vor.u32 1.1754944e-38, %v420
  %v422 = vsel %vm419, %v421, %v417
  %v423 = vmul.f32 1.0, %v422
  %v424 = vtanh.pop %v404
  %v425 = vmul.f32 %v423, %v299
  %427 = vrot.lane.b32.xlu0 %v424, 64
  %v428 = vpop.permute.xlu0 %427
  %v430 = vmul.f32 %v423, %v428
  %432 = vrot.lane.b32.xlu0 %v430, 32
  %v433 = vpop.permute.xlu0 %432
  %v435 = vadd.f32 %v425, %v433
  %v436 = vtanh.pop %v435
  %438 = vrot.lane.b32.xlu0 %v436, 64
  %v439 = vpop.permute.xlu0 %438
  %v441 = vmul.f32 %v423, %v439
  %s442 = scalar_lea.vmem %s44, 40
  %v443 = vld [vmem:[%s442] sm:$0xff]
  %v444 = vadd.f32 %v443, %v400
  %v445 = vxor.u32 %v444, 2147483648
  %v446 = vmul.f32 %v445, 1.442695
  %v447 = vpow.pop %v446
  %v448 = vadd.f32 %v447, 1.0
  %v449 = vrcp.pop %v448
  %v450 = vmul.f32 %v448, %v449
  %v451 = vsub.f32 1.0, %v450
  %v452 = vmul.f32 %v449, %v451
  %v453 = vadd.f32 %v449, %v452
  %vm454 = vweird.f32 %v448
  %vm455 = vweird.f32 %v449
  %vm456 = vmor %vm454, %vm455
  %v457 = vsel %vm456, %v449, %v453
  %v458 = vand.u32 2147483647, %v448
  %vm459 = vcmp.eq.f32.partialorder %v458, 8.507059e+37
  %v460 = vand.u32 %v448, 2147483648
  %v461 = vor.u32 1.1754944e-38, %v460
  %v462 = vsel %vm459, %v461, %v457
  %v463 = vmul.f32 1.0, %v462
  %v464 = vtanh.pop %v444
  %v465 = vmul.f32 %v463, %v339
  %467 = vrot.lane.b32.xlu0 %v464, 64
  %v468 = vpop.permute.xlu0 %467
  %v470 = vmul.f32 %v463, %v468
  %472 = vrot.lane.b32.xlu0 %v470, 32
  %v473 = vpop.permute.xlu0 %472
  %v475 = vadd.f32 %v465, %v473
  %v476 = vtanh.pop %v475
  %478 = vrot.lane.b32.xlu0 %v476, 64
  %v479 = vpop.permute.xlu0 %478
  %v481 = vmul.f32 %v463, %v479
  %483 = vrot.lane.b32.xlu0 %v441, 32
  %v484 = vpop.permute.xlu0 %483
  %s486 = scalar_lea.vmem %s3, 16
  %487 = vst.msk [vmem:[%s486] sm:$0xff] %vm77, %v484
  %489 = vrot.lane.b32.xlu0 %v481, 32
  %v490 = vpop.permute.xlu0 %489
  %s492 = scalar_lea.vmem %s52, 40
  %493 = vst.msk [vmem:[%s492] sm:$0xff] %vm77, %v490
  %v494 = vsel %vm77, %v484, 0
  %496 = vmatpush.msra.mxu0 0.0
  %497 = vmatpush.msra.mxu0 0.0
  %498 = vmatpush.msra.mxu0 0.0
  %499 = vmatpush.msra.mxu0 0.0
  %500 = vmatpush.msra.mxu0 0.0
  %501 = vmatpush.msra.mxu0 0.0
  %502 = vmatpush.msra.mxu0 0.0
  %503 = vmatpush.msra.mxu0 0.0
  %504 = vmatpush.msra.mxu0 0.0
  %505 = vmatpush.msra.mxu0 0.0
  %506 = vmatpush.msra.mxu0 0.0
  %507 = vmatpush.msra.mxu0 0.0
  %508 = vmatpush.msra.mxu0 %v67
  %509 = vmatpush.msra.mxu0 %v66
  %510 = vmatpush.msra.mxu0 %v65
  %511 = vmatpush.msra.mxu0 %v64
  %512 = vmatmul.f32.gmra.mxu0 %v494
  %v513 = vpop.f32.mrf.mxu0
  %v514 = vadd.f32 0.0, %v513
  %515 = vdwg.mxu0
  %v516 = vsel %vm77, %v490, 0
  %518 = vmatpush.msra.mxu0 0.0
  %519 = vmatpush.msra.mxu0 0.0
  %520 = vmatpush.msra.mxu0 0.0
  %521 = vmatpush.msra.mxu0 0.0
  %522 = vmatpush.msra.mxu0 0.0
  %523 = vmatpush.msra.mxu0 0.0
  %524 = vmatpush.msra.mxu0 0.0
  %525 = vmatpush.msra.mxu0 0.0
  %526 = vmatpush.msra.mxu0 0.0
  %527 = vmatpush.msra.mxu0 0.0
  %528 = vmatpush.msra.mxu0 0.0
  %529 = vmatpush.msra.mxu0 0.0
  %530 = vmatpush.msra.mxu0 %v72
  %531 = vmatpush.msra.mxu0 %v71
  %532 = vmatpush.msra.mxu0 %v70
  %533 = vmatpush.msra.mxu0 %v69
  %534 = vmatmul.f32.gmra.mxu0 %v516
  %v535 = vpop.f32.mrf.mxu0
  %v536 = vadd.f32 0.0, %v535
  %537 = vdwg.mxu0
  %s538 = scalar_lea.vmem %s0, 24
  %v539 = vld [vmem:[%s538] sm:$0xff]
  %v540 = vadd.f32 %v539, %v514
  %v541 = vxor.u32 %v540, 2147483648
  %v542 = vmul.f32 %v541, 1.442695
  %v543 = vpow.pop %v542
  %v544 = vadd.f32 %v543, 1.0
  %v545 = vrcp.pop %v544
  %v546 = vmul.f32 %v544, %v545
  %v547 = vsub.f32 1.0, %v546
  %v548 = vmul.f32 %v545, %v547
  %v549 = vadd.f32 %v545, %v548
  %vm550 = vweird.f32 %v544
  %vm551 = vweird.f32 %v545
  %vm552 = vmor %vm550, %vm551
  %v553 = vsel %vm552, %v545, %v549
  %v554 = vand.u32 2147483647, %v544
  %vm555 = vcmp.eq.f32.partialorder %v554, 8.507059e+37
  %v556 = vand.u32 %v544, 2147483648
  %v557 = vor.u32 1.1754944e-38, %v556
  %v558 = vsel %vm555, %v557, %v553
  %v559 = vmul.f32 1.0, %v558
  %v560 = vtanh.pop %v540
  %v561 = vmul.f32 %v559, %v435
  %563 = vrot.lane.b32.xlu0 %v560, 64
  %v564 = vpop.permute.xlu0 %563
  %v566 = vmul.f32 %v559, %v564
  %568 = vrot.lane.b32.xlu0 %v566, 32
  %v569 = vpop.permute.xlu0 %568
  %v571 = vadd.f32 %v561, %v569
  %v572 = vtanh.pop %v571
  %574 = vrot.lane.b32.xlu0 %v572, 64
  %v575 = vpop.permute.xlu0 %574
  %v577 = vmul.f32 %v559, %v575
  %s578 = scalar_lea.vmem %s44, 32
  %v579 = vld [vmem:[%s578] sm:$0xff]
  %v580 = vadd.f32 %v579, %v536
  %v581 = vxor.u32 %v580, 2147483648
  %v582 = vmul.f32 %v581, 1.442695
  %v583 = vpow.pop %v582
  %v584 = vadd.f32 %v583, 1.0
  %v585 = vrcp.pop %v584
  %v586 = vmul.f32 %v584, %v585
  %v587 = vsub.f32 1.0, %v586
  %v588 = vmul.f32 %v585, %v587
  %v589 = vadd.f32 %v585, %v588
  %vm590 = vweird.f32 %v584
  %vm591 = vweird.f32 %v585
  %vm592 = vmor %vm590, %vm591
  %v593 = vsel %vm592, %v585, %v589
  %v594 = vand.u32 2147483647, %v584
  %vm595 = vcmp.eq.f32.partialorder %v594, 8.507059e+37
  %v596 = vand.u32 %v584, 2147483648
  %v597 = vor.u32 1.1754944e-38, %v596
  %v598 = vsel %vm595, %v597, %v593
  %v599 = vmul.f32 1.0, %v598
  %v600 = vtanh.pop %v580
  %v601 = vmul.f32 %v599, %v475
  %603 = vrot.lane.b32.xlu0 %v600, 64
  %v604 = vpop.permute.xlu0 %603
  %v606 = vmul.f32 %v599, %v604
  %608 = vrot.lane.b32.xlu0 %v606, 32
  %v609 = vpop.permute.xlu0 %608
  %v611 = vadd.f32 %v601, %v609
  %v612 = vtanh.pop %v611
  %614 = vrot.lane.b32.xlu0 %v612, 64
  %v615 = vpop.permute.xlu0 %614
  %v617 = vmul.f32 %v599, %v615
  %619 = vrot.lane.b32.xlu0 %v577, 32
  %v620 = vpop.permute.xlu0 %619
  %s622 = scalar_lea.vmem %s3, 24
  %623 = vst.msk [vmem:[%s622] sm:$0xff] %vm77, %v620
  %625 = vrot.lane.b32.xlu0 %v617, 32
  %v626 = vpop.permute.xlu0 %625
  %s628 = scalar_lea.vmem %s52, 32
  %629 = vst.msk [vmem:[%s628] sm:$0xff] %vm77, %v626
  %v630 = vsel %vm77, %v620, 0
  %632 = vmatpush.msra.mxu0 0.0
  %633 = vmatpush.msra.mxu0 0.0
  %634 = vmatpush.msra.mxu0 0.0
  %635 = vmatpush.msra.mxu0 0.0
  %636 = vmatpush.msra.mxu0 0.0
  %637 = vmatpush.msra.mxu0 0.0
  %638 = vmatpush.msra.mxu0 0.0
  %639 = vmatpush.msra.mxu0 0.0
  %640 = vmatpush.msra.mxu0 0.0
  %641 = vmatpush.msra.mxu0 0.0
  %642 = vmatpush.msra.mxu0 0.0
  %643 = vmatpush.msra.mxu0 0.0
  %644 = vmatpush.msra.mxu0 %v67
  %645 = vmatpush.msra.mxu0 %v66
  %646 = vmatpush.msra.mxu0 %v65
  %647 = vmatpush.msra.mxu0 %v64
  %648 = vmatmul.f32.gmra.mxu0 %v630
  %v649 = vpop.f32.mrf.mxu0
  %v650 = vadd.f32 0.0, %v649
  %651 = vdwg.mxu0
  %v652 = vsel %vm77, %v626, 0
  %654 = vmatpush.msra.mxu0 0.0
  %655 = vmatpush.msra.mxu0 0.0
  %656 = vmatpush.msra.mxu0 0.0
  %657 = vmatpush.msra.mxu0 0.0
  %658 = vmatpush.msra.mxu0 0.0
  %659 = vmatpush.msra.mxu0 0.0
  %660 = vmatpush.msra.mxu0 0.0
  %661 = vmatpush.msra.mxu0 0.0
  %662 = vmatpush.msra.mxu0 0.0
  %663 = vmatpush.msra.mxu0 0.0
  %664 = vmatpush.msra.mxu0 0.0
  %665 = vmatpush.msra.mxu0 0.0
  %666 = vmatpush.msra.mxu0 %v72
  %667 = vmatpush.msra.mxu0 %v71
  %668 = vmatpush.msra.mxu0 %v70
  %669 = vmatpush.msra.mxu0 %v69
  %670 = vmatmul.f32.gmra.mxu0 %v652
  %v671 = vpop.f32.mrf.mxu0
  %v672 = vadd.f32 0.0, %v671
  %673 = vdwg.mxu0
  %s674 = scalar_lea.vmem %s0, 32
  %v675 = vld [vmem:[%s674] sm:$0xff]
  %v676 = vadd.f32 %v675, %v650
  %v677 = vxor.u32 %v676, 2147483648
  %v678 = vmul.f32 %v677, 1.442695
  %v679 = vpow.pop %v678
  %v680 = vadd.f32 %v679, 1.0
  %v681 = vrcp.pop %v680
  %v682 = vmul.f32 %v680, %v681
  %v683 = vsub.f32 1.0, %v682
  %v684 = vmul.f32 %v681, %v683
  %v685 = vadd.f32 %v681, %v684
  %vm686 = vweird.f32 %v680
  %vm687 = vweird.f32 %v681
  %vm688 = vmor %vm686, %vm687
  %v689 = vsel %vm688, %v681, %v685
  %v690 = vand.u32 2147483647, %v680
  %vm691 = vcmp.eq.f32.partialorder %v690, 8.507059e+37
  %v692 = vand.u32 %v680, 2147483648
  %v693 = vor.u32 1.1754944e-38, %v692
  %v694 = vsel %vm691, %v693, %v689
  %v695 = vmul.f32 1.0, %v694
  %v696 = vtanh.pop %v676
  %v697 = vmul.f32 %v695, %v571
  %699 = vrot.lane.b32.xlu0 %v696, 64
  %v700 = vpop.permute.xlu0 %699
  %v702 = vmul.f32 %v695, %v700
  %704 = vrot.lane.b32.xlu0 %v702, 32
  %v705 = vpop.permute.xlu0 %704
  %v707 = vadd.f32 %v697, %v705
  %v708 = vtanh.pop %v707
  %710 = vrot.lane.b32.xlu0 %v708, 64
  %v711 = vpop.permute.xlu0 %710
  %v713 = vmul.f32 %v695, %v711
  %s714 = scalar_lea.vmem %s44, 24
  %v715 = vld [vmem:[%s714] sm:$0xff]
  %v716 = vadd.f32 %v715, %v672
  %v717 = vxor.u32 %v716, 2147483648
  %v718 = vmul.f32 %v717, 1.442695
  %v719 = vpow.pop %v718
  %v720 = vadd.f32 %v719, 1.0
  %v721 = vrcp.pop %v720
  %v722 = vmul.f32 %v720, %v721
  %v723 = vsub.f32 1.0, %v722
  %v724 = vmul.f32 %v721, %v723
  %v725 = vadd.f32 %v721, %v724
  %vm726 = vweird.f32 %v720
  %vm727 = vweird.f32 %v721
  %vm728 = vmor %vm726, %vm727
  %v729 = vsel %vm728, %v721, %v725
  %v730 = vand.u32 2147483647, %v720
  %vm731 = vcmp.eq.f32.partialorder %v730, 8.507059e+37
  %v732 = vand.u32 %v720, 2147483648
  %v733 = vor.u32 1.1754944e-38, %v732
  %v734 = vsel %vm731, %v733, %v729
  %v735 = vmul.f32 1.0, %v734
  %v736 = vtanh.pop %v716
  %v737 = vmul.f32 %v735, %v611
  %739 = vrot.lane.b32.xlu0 %v736, 64
  %v740 = vpop.permute.xlu0 %739
  %v742 = vmul.f32 %v735, %v740
  %744 = vrot.lane.b32.xlu0 %v742, 32
  %v745 = vpop.permute.xlu0 %744
  %v747 = vadd.f32 %v737, %v745
  %v748 = vtanh.pop %v747
  %750 = vrot.lane.b32.xlu0 %v748, 64
  %v751 = vpop.permute.xlu0 %750
  %v753 = vmul.f32 %v735, %v751
  %755 = vrot.lane.b32.xlu0 %v713, 32
  %v756 = vpop.permute.xlu0 %755
  %s758 = scalar_lea.vmem %s3, 32
  %759 = vst.msk [vmem:[%s758] sm:$0xff] %vm77, %v756
  %761 = vrot.lane.b32.xlu0 %v753, 32
  %v762 = vpop.permute.xlu0 %761
  %s764 = scalar_lea.vmem %s52, 24
  %765 = vst.msk [vmem:[%s764] sm:$0xff] %vm77, %v762
  %v766 = vsel %vm77, %v756, 0
  %768 = vmatpush.msra.mxu0 0.0
  %769 = vmatpush.msra.mxu0 0.0
  %770 = vmatpush.msra.mxu0 0.0
  %771 = vmatpush.msra.mxu0 0.0
  %772 = vmatpush.msra.mxu0 0.0
  %773 = vmatpush.msra.mxu0 0.0
  %774 = vmatpush.msra.mxu0 0.0
  %775 = vmatpush.msra.mxu0 0.0
  %776 = vmatpush.msra.mxu0 0.0
  %777 = vmatpush.msra.mxu0 0.0
  %778 = vmatpush.msra.mxu0 0.0
  %779 = vmatpush.msra.mxu0 0.0
  %780 = vmatpush.msra.mxu0 %v67
  %781 = vmatpush.msra.mxu0 %v66
  %782 = vmatpush.msra.mxu0 %v65
  %783 = vmatpush.msra.mxu0 %v64
  %784 = vmatmul.f32.gmra.mxu0 %v766
  %v785 = vpop.f32.mrf.mxu0
  %v786 = vadd.f32 0.0, %v785
  %787 = vdwg.mxu0
  %v788 = vsel %vm77, %v762, 0
  %790 = vmatpush.msra.mxu0 0.0
  %791 = vmatpush.msra.mxu0 0.0
  %792 = vmatpush.msra.mxu0 0.0
  %793 = vmatpush.msra.mxu0 0.0
  %794 = vmatpush.msra.mxu0 0.0
  %795 = vmatpush.msra.mxu0 0.0
  %796 = vmatpush.msra.mxu0 0.0
  %797 = vmatpush.msra.mxu0 0.0
  %798 = vmatpush.msra.mxu0 0.0
  %799 = vmatpush.msra.mxu0 0.0
  %800 = vmatpush.msra.mxu0 0.0
  %801 = vmatpush.msra.mxu0 0.0
  %802 = vmatpush.msra.mxu0 %v72
  %803 = vmatpush.msra.mxu0 %v71
  %804 = vmatpush.msra.mxu0 %v70
  %805 = vmatpush.msra.mxu0 %v69
  %806 = vmatmul.f32.gmra.mxu0 %v788
  %v807 = vpop.f32.mrf.mxu0
  %v808 = vadd.f32 0.0, %v807
  %809 = vdwg.mxu0
  %s810 = scalar_lea.vmem %s0, 40
  %v811 = vld [vmem:[%s810] sm:$0xff]
  %v812 = vadd.f32 %v811, %v786
  %v813 = vxor.u32 %v812, 2147483648
  %v814 = vmul.f32 %v813, 1.442695
  %v815 = vpow.pop %v814
  %v816 = vadd.f32 %v815, 1.0
  %v817 = vrcp.pop %v816
  %v818 = vmul.f32 %v816, %v817
  %v819 = vsub.f32 1.0, %v818
  %v820 = vmul.f32 %v817, %v819
  %v821 = vadd.f32 %v817, %v820
  %vm822 = vweird.f32 %v816
  %vm823 = vweird.f32 %v817
  %vm824 = vmor %vm822, %vm823
  %v825 = vsel %vm824, %v817, %v821
  %v826 = vand.u32 2147483647, %v816
  %vm827 = vcmp.eq.f32.partialorder %v826, 8.507059e+37
  %v828 = vand.u32 %v816, 2147483648
  %v829 = vor.u32 1.1754944e-38, %v828
  %v830 = vsel %vm827, %v829, %v825
  %v831 = vmul.f32 1.0, %v830
  %v832 = vtanh.pop %v812
  %v833 = vmul.f32 %v831, %v707
  %835 = vrot.lane.b32.xlu0 %v832, 64
  %v836 = vpop.permute.xlu0 %835
  %v838 = vmul.f32 %v831, %v836
  %840 = vrot.lane.b32.xlu0 %v838, 32
  %v841 = vpop.permute.xlu0 %840
  %v843 = vadd.f32 %v833, %v841
  %v844 = vtanh.pop %v843
  %846 = vrot.lane.b32.xlu0 %v844, 64
  %v847 = vpop.permute.xlu0 %846
  %v849 = vmul.f32 %v831, %v847
  %s850 = scalar_lea.vmem %s44, 16
  %v851 = vld [vmem:[%s850] sm:$0xff]
  %v852 = vadd.f32 %v851, %v808
  %v853 = vxor.u32 %v852, 2147483648
  %v854 = vmul.f32 %v853, 1.442695
  %v855 = vpow.pop %v854
  %v856 = vadd.f32 %v855, 1.0
  %v857 = vrcp.pop %v856
  %v858 = vmul.f32 %v856, %v857
  %v859 = vsub.f32 1.0, %v858
  %v860 = vmul.f32 %v857, %v859
  %v861 = vadd.f32 %v857, %v860
  %vm862 = vweird.f32 %v856
  %vm863 = vweird.f32 %v857
  %vm864 = vmor %vm862, %vm863
  %v865 = vsel %vm864, %v857, %v861
  %v866 = vand.u32 2147483647, %v856
  %vm867 = vcmp.eq.f32.partialorder %v866, 8.507059e+37
  %v868 = vand.u32 %v856, 2147483648
  %v869 = vor.u32 1.1754944e-38, %v868
  %v870 = vsel %vm867, %v869, %v865
  %v871 = vmul.f32 1.0, %v870
  %v872 = vtanh.pop %v852
  %v873 = vmul.f32 %v871, %v747
  %875 = vrot.lane.b32.xlu0 %v872, 64
  %v876 = vpop.permute.xlu0 %875
  %v878 = vmul.f32 %v871, %v876
  %880 = vrot.lane.b32.xlu0 %v878, 32
  %v881 = vpop.permute.xlu0 %880
  %v883 = vadd.f32 %v873, %v881
  %v884 = vtanh.pop %v883
  %886 = vrot.lane.b32.xlu0 %v884, 64
  %v887 = vpop.permute.xlu0 %886
  %v889 = vmul.f32 %v871, %v887
  %891 = vrot.lane.b32.xlu0 %v849, 32
  %v892 = vpop.permute.xlu0 %891
  %s894 = scalar_lea.vmem %s3, 40
  %895 = vst.msk [vmem:[%s894] sm:$0xff] %vm77, %v892
  %897 = vrot.lane.b32.xlu0 %v889, 32
  %v898 = vpop.permute.xlu0 %897
  %s900 = scalar_lea.vmem %s52, 16
  %901 = vst.msk [vmem:[%s900] sm:$0xff] %vm77, %v898
  %v902 = vsel %vm77, %v892, 0
  %904 = vmatpush.msra.mxu0 0.0
  %905 = vmatpush.msra.mxu0 0.0
  %906 = vmatpush.msra.mxu0 0.0
  %907 = vmatpush.msra.mxu0 0.0
  %908 = vmatpush.msra.mxu0 0.0
  %909 = vmatpush.msra.mxu0 0.0
  %910 = vmatpush.msra.mxu0 0.0
  %911 = vmatpush.msra.mxu0 0.0
  %912 = vmatpush.msra.mxu0 0.0
  %913 = vmatpush.msra.mxu0 0.0
  %914 = vmatpush.msra.mxu0 0.0
  %915 = vmatpush.msra.mxu0 0.0
  %916 = vmatpush.msra.mxu0 %v67
  %917 = vmatpush.msra.mxu0 %v66
  %918 = vmatpush.msra.mxu0 %v65
  %919 = vmatpush.msra.mxu0 %v64
  %920 = vmatmul.f32.gmra.mxu0 %v902
  %v921 = vpop.f32.mrf.mxu0
  %v922 = vadd.f32 0.0, %v921
  %923 = vdwg.mxu0
  %v924 = vsel %vm77, %v898, 0
  %926 = vmatpush.msra.mxu0 0.0
  %927 = vmatpush.msra.mxu0 0.0
  %928 = vmatpush.msra.mxu0 0.0
  %929 = vmatpush.msra.mxu0 0.0
  %930 = vmatpush.msra.mxu0 0.0
  %931 = vmatpush.msra.mxu0 0.0
  %932 = vmatpush.msra.mxu0 0.0
  %933 = vmatpush.msra.mxu0 0.0
  %934 = vmatpush.msra.mxu0 0.0
  %935 = vmatpush.msra.mxu0 0.0
  %936 = vmatpush.msra.mxu0 0.0
  %937 = vmatpush.msra.mxu0 0.0
  %938 = vmatpush.msra.mxu0 %v72
  %939 = vmatpush.msra.mxu0 %v71
  %940 = vmatpush.msra.mxu0 %v70
  %941 = vmatpush.msra.mxu0 %v69
  %942 = vmatmul.f32.gmra.mxu0 %v924
  %v943 = vpop.f32.mrf.mxu0
  %v944 = vadd.f32 0.0, %v943
  %945 = vdwg.mxu0
  %s946 = scalar_lea.vmem %s0, 48
  %v947 = vld [vmem:[%s946] sm:$0xff]
  %v948 = vadd.f32 %v947, %v922
  %v949 = vxor.u32 %v948, 2147483648
  %v950 = vmul.f32 %v949, 1.442695
  %v951 = vpow.pop %v950
  %v952 = vadd.f32 %v951, 1.0
  %v953 = vrcp.pop %v952
  %v954 = vmul.f32 %v952, %v953
  %v955 = vsub.f32 1.0, %v954
  %v956 = vmul.f32 %v953, %v955
  %v957 = vadd.f32 %v953, %v956
  %vm958 = vweird.f32 %v952
  %vm959 = vweird.f32 %v953
  %vm960 = vmor %vm958, %vm959
  %v961 = vsel %vm960, %v953, %v957
  %v962 = vand.u32 2147483647, %v952
  %vm963 = vcmp.eq.f32.partialorder %v962, 8.507059e+37
  %v964 = vand.u32 %v952, 2147483648
  %v965 = vor.u32 1.1754944e-38, %v964
  %v966 = vsel %vm963, %v965, %v961
  %v967 = vmul.f32 1.0, %v966
  %v968 = vtanh.pop %v948
  %v969 = vmul.f32 %v967, %v843
  %971 = vrot.lane.b32.xlu0 %v968, 64
  %v972 = vpop.permute.xlu0 %971
  %v974 = vmul.f32 %v967, %v972
  %976 = vrot.lane.b32.xlu0 %v974, 32
  %v977 = vpop.permute.xlu0 %976
  %v979 = vadd.f32 %v969, %v977
  %v980 = vtanh.pop %v979
  %982 = vrot.lane.b32.xlu0 %v980, 64
  %v983 = vpop.permute.xlu0 %982
  %v985 = vmul.f32 %v967, %v983
  %s986 = scalar_lea.vmem %s44, 8
  %v987 = vld [vmem:[%s986] sm:$0xff]
  %v988 = vadd.f32 %v987, %v944
  %v989 = vxor.u32 %v988, 2147483648
  %v990 = vmul.f32 %v989, 1.442695
  %v991 = vpow.pop %v990
  %v992 = vadd.f32 %v991, 1.0
  %v993 = vrcp.pop %v992
  %v994 = vmul.f32 %v992, %v993
  %v995 = vsub.f32 1.0, %v994
  %v996 = vmul.f32 %v993, %v995
  %v997 = vadd.f32 %v993, %v996
  %vm998 = vweird.f32 %v992
  %vm999 = vweird.f32 %v993
  %vm1000 = vmor %vm998, %vm999
  %v1001 = vsel %vm1000, %v993, %v997
  %v1002 = vand.u32 2147483647, %v992
  %vm1003 = vcmp.eq.f32.partialorder %v1002, 8.507059e+37
  %v1004 = vand.u32 %v992, 2147483648
  %v1005 = vor.u32 1.1754944e-38, %v1004
  %v1006 = vsel %vm1003, %v1005, %v1001
  %v1007 = vmul.f32 1.0, %v1006
  %v1008 = vtanh.pop %v988
  %v1009 = vmul.f32 %v1007, %v883
  %1011 = vrot.lane.b32.xlu0 %v1008, 64
  %v1012 = vpop.permute.xlu0 %1011
  %v1014 = vmul.f32 %v1007, %v1012
  %1016 = vrot.lane.b32.xlu0 %v1014, 32
  %v1017 = vpop.permute.xlu0 %1016
  %v1019 = vadd.f32 %v1009, %v1017
  %v1020 = vtanh.pop %v1019
  %1022 = vrot.lane.b32.xlu0 %v1020, 64
  %v1023 = vpop.permute.xlu0 %1022
  %v1025 = vmul.f32 %v1007, %v1023
  %1027 = vrot.lane.b32.xlu0 %v985, 32
  %v1028 = vpop.permute.xlu0 %1027
  %s1030 = scalar_lea.vmem %s3, 48
  %1031 = vst.msk [vmem:[%s1030] sm:$0xff] %vm77, %v1028
  %1033 = vrot.lane.b32.xlu0 %v1025, 32
  %v1034 = vpop.permute.xlu0 %1033
  %s1036 = scalar_lea.vmem %s52, 8
  %1037 = vst.msk [vmem:[%s1036] sm:$0xff] %vm77, %v1034
  %v1038 = vsel %vm77, %v1028, 0
  %1040 = vmatpush.msra.mxu0 0.0
  %1041 = vmatpush.msra.mxu0 0.0
  %1042 = vmatpush.msra.mxu0 0.0
  %1043 = vmatpush.msra.mxu0 0.0
  %1044 = vmatpush.msra.mxu0 0.0
  %1045 = vmatpush.msra.mxu0 0.0
  %1046 = vmatpush.msra.mxu0 0.0
  %1047 = vmatpush.msra.mxu0 0.0
  %1048 = vmatpush.msra.mxu0 0.0
  %1049 = vmatpush.msra.mxu0 0.0
  %1050 = vmatpush.msra.mxu0 0.0
  %1051 = vmatpush.msra.mxu0 0.0
  %1052 = vmatpush.msra.mxu0 %v67
  %1053 = vmatpush.msra.mxu0 %v66
  %1054 = vmatpush.msra.mxu0 %v65
  %1055 = vmatpush.msra.mxu0 %v64
  %1056 = vmatmul.f32.gmra.mxu0 %v1038
  %v1057 = vpop.f32.mrf.mxu0
  %v1058 = vadd.f32 0.0, %v1057
  %1059 = vdwg.mxu0
  %v1060 = vsel %vm77, %v1034, 0
  %1062 = vmatpush.msra.mxu0 0.0
  %1063 = vmatpush.msra.mxu0 0.0
  %1064 = vmatpush.msra.mxu0 0.0
  %1065 = vmatpush.msra.mxu0 0.0
  %1066 = vmatpush.msra.mxu0 0.0
  %1067 = vmatpush.msra.mxu0 0.0
  %1068 = vmatpush.msra.mxu0 0.0
  %1069 = vmatpush.msra.mxu0 0.0
  %1070 = vmatpush.msra.mxu0 0.0
  %1071 = vmatpush.msra.mxu0 0.0
  %1072 = vmatpush.msra.mxu0 0.0
  %1073 = vmatpush.msra.mxu0 0.0
  %1074 = vmatpush.msra.mxu0 %v72
  %1075 = vmatpush.msra.mxu0 %v71
  %1076 = vmatpush.msra.mxu0 %v70
  %1077 = vmatpush.msra.mxu0 %v69
  %1078 = vmatmul.f32.gmra.mxu0 %v1060
  %v1079 = vpop.f32.mrf.mxu0
  %v1080 = vadd.f32 0.0, %v1079
  %1081 = vdwg.mxu0
  %s1082 = scalar_lea.vmem %s0, 56
  %v1083 = vld [vmem:[%s1082] sm:$0xff]
  %v1084 = vadd.f32 %v1083, %v1058
  %v1085 = vxor.u32 %v1084, 2147483648
  %v1086 = vmul.f32 %v1085, 1.442695
  %v1087 = vpow.pop %v1086
  %v1088 = vadd.f32 %v1087, 1.0
  %v1089 = vrcp.pop %v1088
  %v1090 = vmul.f32 %v1088, %v1089
  %v1091 = vsub.f32 1.0, %v1090
  %v1092 = vmul.f32 %v1089, %v1091
  %v1093 = vadd.f32 %v1089, %v1092
  %vm1094 = vweird.f32 %v1088
  %vm1095 = vweird.f32 %v1089
  %vm1096 = vmor %vm1094, %vm1095
  %v1097 = vsel %vm1096, %v1089, %v1093
  %v1098 = vand.u32 2147483647, %v1088
  %vm1099 = vcmp.eq.f32.partialorder %v1098, 8.507059e+37
  %v1100 = vand.u32 %v1088, 2147483648
  %v1101 = vor.u32 1.1754944e-38, %v1100
  %v1102 = vsel %vm1099, %v1101, %v1097
  %v1103 = vmul.f32 1.0, %v1102
  %v1104 = vtanh.pop %v1084
  %v1105 = vmul.f32 %v1103, %v979
  %1107 = vrot.lane.b32.xlu0 %v1104, 64
  %v1108 = vpop.permute.xlu0 %1107
  %v1110 = vmul.f32 %v1103, %v1108
  %1112 = vrot.lane.b32.xlu0 %v1110, 32
  %v1113 = vpop.permute.xlu0 %1112
  %v1115 = vadd.f32 %v1105, %v1113
  %v1116 = vtanh.pop %v1115
  %1118 = vrot.lane.b32.xlu0 %v1116, 64
  %v1119 = vpop.permute.xlu0 %1118
  %v1121 = vmul.f32 %v1103, %v1119
  %v1122 = vld [vmem:[%s44] sm:$0xff]
  %v1123 = vadd.f32 %v1122, %v1080
  %v1124 = vxor.u32 %v1123, 2147483648
  %v1125 = vmul.f32 %v1124, 1.442695
  %v1126 = vpow.pop %v1125
  %v1127 = vadd.f32 %v1126, 1.0
  %v1128 = vrcp.pop %v1127
  %v1129 = vmul.f32 %v1127, %v1128
  %v1130 = vsub.f32 1.0, %v1129
  %v1131 = vmul.f32 %v1128, %v1130
  %v1132 = vadd.f32 %v1128, %v1131
  %vm1133 = vweird.f32 %v1127
  %vm1134 = vweird.f32 %v1128
  %vm1135 = vmor %vm1133, %vm1134
  %v1136 = vsel %vm1135, %v1128, %v1132
  %v1137 = vand.u32 2147483647, %v1127
  %vm1138 = vcmp.eq.f32.partialorder %v1137, 8.507059e+37
  %v1139 = vand.u32 %v1127, 2147483648
  %v1140 = vor.u32 1.1754944e-38, %v1139
  %v1141 = vsel %vm1138, %v1140, %v1136
  %v1142 = vmul.f32 1.0, %v1141
  %v1143 = vtanh.pop %v1123
  %v1144 = vmul.f32 %v1142, %v1019
  %1146 = vrot.lane.b32.xlu0 %v1143, 64
  %v1147 = vpop.permute.xlu0 %1146
  %v1149 = vmul.f32 %v1142, %v1147
  %1151 = vrot.lane.b32.xlu0 %v1149, 32
  %v1152 = vpop.permute.xlu0 %1151
  %v1154 = vadd.f32 %v1144, %v1152
  %v1155 = vtanh.pop %v1154
  %1157 = vrot.lane.b32.xlu0 %v1155, 64
  %v1158 = vpop.permute.xlu0 %1157
  %v1160 = vmul.f32 %v1142, %v1158
  %1162 = vrot.lane.b32.xlu0 %v1121, 32
  %v1163 = vpop.permute.xlu0 %1162
  %s1165 = scalar_lea.vmem %s3, 56
  %1166 = vst.msk [vmem:[%s1165] sm:$0xff] %vm77, %v1163
  %1168 = vrot.lane.b32.xlu0 %v1160, 32
  %v1169 = vpop.permute.xlu0 %1168
  %1171 = vst.msk [vmem:[%s52] sm:$0xff] %vm77, %v1169
  %1172 = vst.msk [vmem:[#allocation2] sm:$0xff] %vm77, %v1163
  %1174 = vrot.lane.b32.xlu0 %v1115, 96
  %v1175 = vpop.permute.xlu0 %1174
  %1177 = vst.msk [vmem:[#allocation3] sm:$0xff] %vm77, %v1175
  %1178 = vst.msk [vmem:[#allocation4] sm:$0xff] %vm77, %v1169
  %1180 = vrot.lane.b32.xlu0 %v1154, 96
  %v1181 = vpop.permute.xlu0 %1180
  %1183 = vst.msk [vmem:[#allocation5] sm:$0xff] %vm77, %v1181
  %s1184 = ssub.s32 0, 0
  %s1185 = smul.u32 8, %s1184
  %p1186 = scmp.lt.s32.totalorder %s1185, 7
  %s1187 = scalar_select %p1186, %s1185, 7
  %s1188 = smul.addr %s1187, 8
  %s1189 = scalar_lea.vmem %s4, %s1188
  // Predicated region
  $region18: #{_lambda_.2} parent=0 // pred_check
    _
  $region19: #{_lambda_.2} parent=0 // pred_check_branch
    %1191 = sbr.rel (0) target = $region21
  $region20: #{_lambda_.2} parent=0 // pred_region
    _
  $region21: #{_lambda_.2} parent=0 // pred_fallthru
    _
  // Predicated region
  $region22: #{_lambda_.2} parent=0 // pred_check
    _
  $region23: #{_lambda_.2} parent=0 // pred_check_branch
    %1193 = sbr.rel (0) target = $region25
  $region24: #{_lambda_.2} parent=0 // pred_region
    %s1194 = ssub.s32 0, 0
    %s1195 = smul.u32 8, %s1194
  $region25: #{_lambda_.2} parent=0 // pred_fallthru
    _
  // Predicated region
  $region26: #{_lambda_.2} parent=0 // pred_check
    _
  $region27: #{_lambda_.2} parent=0 // pred_check_branch
    %1197 = sbr.rel (0) target = $region29
  $region28: #{_lambda_.2} parent=0 // pred_region
    _
  $region29: #{_lambda_.2} parent=0 // pred_fallthru
    _
  // Predicated region
  $region30: #{_lambda_.2} parent=0 // pred_check
    _
  $region31: #{_lambda_.2} parent=0 // pred_check_branch
    %1199 = sbr.rel (0) target = $region33
  $region32: #{_lambda_.2} parent=0 // pred_region
    %s1200 = ssub.s32 0, 0
    %s1201 = smul.u32 8, %s1200
    %p1202 = scmp.lt.s32.totalorder %s1201, 7
    %s1203 = scalar_select %p1202, %s1201, 7
    %s1204 = smul.addr %s1203, 8
    %s1205 = scalar_lea.vmem %s4, %s1204
  $region33: #{_lambda_.2} parent=0 // pred_fallthru
    _

</llo_original>
